<compile_context>
chip_gen: v5e
topology: v5e:2x2
jax: 0.10.0
libtpu: 0.0.40
codegen_flags: <defaults>
</compile_context>

<pallas_src>
import functools

import jax
import jax.numpy as jnp
from jax.experimental import pallas as pl
from jax.experimental.pallas import tpu as pltpu


# -----------------------------------------------------------------------------
# Fused Pallas kernel: whole TCN for one packed group of G batch elements.
# -----------------------------------------------------------------------------
def _fused_tcn_kernel(*refs, layer_cfgs, ksize, t_pad, pad_lanes, g_pack):
    # refs = (x_ref, mask_ref, *weight_refs, o_ref, act_buf, h_buf)
    x_ref, mask_ref = refs[0], refs[1]
    o_ref = refs[-3]
    act_buf = refs[-2]           # bf16 (c_max_pad, W): current layer input
    h_buf = refs[-1]             # bf16 (c_max_pad, W): hidden h1
    w_refs = refs[2:-3]

    seg = pad_lanes + t_pad
    W = g_pack * seg
    Wa = W - pad_lanes           # full-width activation / matmul width
    cmax = act_buf.shape[0]
    c0_pad = x_ref.shape[1]
    act_dtype = act_buf.dtype

    # Zero the causal-history (pad) columns.  Done every grid step: with
    # "parallel" megacore sharding each TensorCore has its own scratch copy,
    # so a program_id()==0 guard would skip the second core's first step.
    zeros_pad = jnp.zeros((cmax, pad_lanes), act_dtype)
    for g in range(g_pack):
        act_buf[:, g * seg:g * seg + pad_lanes] = zeros_pad
        h_buf[:, g * seg:g * seg + pad_lanes] = zeros_pad

    # Scatter the packed batch elements into act_buf's data segments
    # (128-aligned, lane-dense stores).
    for g in range(g_pack):
        act_buf[0:c0_pad, g * seg + pad_lanes:(g + 1) * seg] = x_ref[g]

    mask = mask_ref[...]         # (1, Wa) f32: 1 on data cols, 0 on interior pads

    def conv(src_buf, c_in, w_ref, b_ref, dilation, zero_shift_val):
        # im2col: K causally-shifted full-width views stacked along sublanes,
        # then ONE bf16 MXU matmul with f32 accumulation.  The shift-0 tap is
        # reused from vregs (identical to what was just stored to src_buf).
        # TODO(synk): on v7x, K accumulating matmuls into the MRB would skip
        # the sublane-stack copy.
        taps = []
        for k in range(ksize):
            shift = (ksize - 1 - k) * dilation
            if shift == 0 and zero_shift_val is not None:
                taps.append(zero_shift_val)
            else:
                start = pad_lanes - shift          # static slice of padded buffer
                taps.append(src_buf[0:c_in, start:start + Wa])
        stacked = taps[0] if ksize == 1 else jnp.concatenate(taps, axis=0)
        acc = jnp.dot(w_ref[...], stacked, preferred_element_type=jnp.float32)
        return acc + b_ref[...]                    # (C_out, 1) broadcasts over cols

    x_bf = None        # full-width bf16 layer input (zeros on interior pad cols)
    out_f32 = None
    idx = 0
    for (c_in_p, c_out_p, dilation, has_ds) in layer_cfgs:
        w1_ref, b1_ref, w2_ref, b2_ref = w_refs[idx:idx + 4]
        idx += 4
        if has_ds:
            wd_ref, bd_ref = w_refs[idx:idx + 2]
            idx += 2

        if x_bf is None:                            # layer 0: single VMEM load
            x_bf = act_buf[0:c_in_p, pad_lanes:W]

        h1 = jnp.maximum(
            conv(act_buf, c_in_p, w1_ref, b1_ref, dilation, x_bf), 0.0)
        if g_pack > 1:
            h1 = h1 * mask                          # keep interior pads zero
        h1_bf = h1.astype(act_dtype)
        h_buf[0:c_out_p, pad_lanes:W] = h1_bf       # single full-width store

        h2 = jnp.maximum(
            conv(h_buf, c_out_p, w2_ref, b2_ref, dilation, h1_bf), 0.0)

        if has_ds:
            res = jnp.dot(wd_ref[...], x_bf,
                          preferred_element_type=jnp.float32) + bd_ref[...]
        else:
            res = x_bf.astype(jnp.float32)          # identity residual (bf16 src)
        out_f32 = jnp.maximum(h2 + res, 0.0)
        if g_pack > 1:
            out_f32 = out_f32 * mask
        x_bf = out_f32.astype(act_dtype)
        act_buf[0:c_out_p, pad_lanes:W] = x_bf      # next layer's input

    # Unpack per-element f32 outputs: 128-aligned, lane-dense static slices.
    for g in range(g_pack):
        o_ref[g] = out_f32[:, g * seg:g * seg + t_pad].astype(o_ref.dtype)


# -----------------------------------------------------------------------------
# Wrapper: padding, batch packing, im2col weight packing, BlockSpecs, call.
# -----------------------------------------------------------------------------
def _round_up(n, m):
    return (n + m - 1) // m * m


def _pad2d(w, rows, cols):
    return jnp.zeros((rows, cols), w.dtype).at[:w.shape[0], :w.shape[1]].set(w)


def _pad_bias(b, rows):
    return jnp.zeros((rows, 1), jnp.float32).at[:b.shape[0], 0].set(b)


def _im2col_weight(w, c_out_pad, c_in_pad):
    # w: (C_out, C_in, K) -> (C_out_pad, K*C_in_pad); tap-k block occupies
    # columns [k*C_in_pad, (k+1)*C_in_pad), matching the sublane-stacked input.
    K = w.shape[2]
    blocks = [_pad2d(w[:, :, k], c_out_pad, c_in_pad) for k in range(K)]
    return jnp.concatenate(blocks, axis=1)


def temporal_conv_net(x, params, kernel_size, mxu_dtype=jnp.bfloat16):
    """Fused TCN forward. x: (B, C_in, T) -> (B, num_channels[-1], T) in f32."""
    B, c_in0, T = x.shape
    K = kernel_size
    t_pad = _round_up(T, 128)
    c0_pad = _round_up(c_in0, 8)
    act_bytes = jnp.dtype(mxu_dtype).itemsize

    layer_cfgs, flat_args = [], []
    c_max_pad, max_shift = c0_pad, 1
    c_in, c_in_pad = c_in0, c0_pad
    for p in params:
        c_out = p["w1"].shape[0]
        c_out_pad = _round_up(c_out, 8)
        d = int(p["dilation"])
        has_ds = p["wd"] is not None
        max_shift = max(max_shift, (K - 1) * d)
        c_max_pad = max(c_max_pad, c_out_pad)

        flat_args += [
            _im2col_weight(p["w1"], c_out_pad, c_in_pad).astype(mxu_dtype),
            _pad_bias(p["b1"], c_out_pad),
            _im2col_weight(p["w2"], c_out_pad, c_out_pad).astype(mxu_dtype),
            _pad_bias(p["b2"], c_out_pad),
        ]
        if has_ds:
            flat_args += [
                _pad2d(p["wd"], c_out_pad, c_in_pad).astype(mxu_dtype),
                _pad_bias(p["bd"], c_out_pad),
            ]
        layer_cfgs.append((c_in_pad, c_out_pad, d, has_ds))
        c_in, c_in_pad = c_out, c_out_pad

    c_last, c_last_pad = c_in, c_in_pad
    pad_lanes = _round_up(max_shift, 128)    # aligned zero-history region
    seg = pad_lanes + t_pad

    # Batch packing: stream G elements per grid step (target >= ~512 lanes per
    # matmul) while keeping the two scratch buffers under ~24 MiB total.
    scratch_per_elem = 2 * c_max_pad * seg * act_bytes
    g_cap = max(1, (24 << 20) // max(scratch_per_elem, 1))
    g_target = max(1, 512 // t_pad)
    g_pack = max(1, min(g_target, B, g_cap))
    b_pad = _round_up(B, g_pack)
    n_groups = b_pad // g_pack
    W = g_pack * seg
    Wa = W - pad_lanes

    # bf16 input (halves input HBM traffic; kernel matmuls are bf16 anyway).
    # Right time padding is harmless because the convolution is causal.
    xp = jnp.zeros((b_pad, c0_pad, t_pad), mxu_dtype).at[:B, :c_in0, :T].set(
        x.astype(mxu_dtype))

    # Interior-pad-column mask: 1 on data columns, 0 on the causal-history
    # columns of elements 1..G-1 (element 0's history sits left of the view).
    j = jnp.arange(Wa, dtype=jnp.int32)
    mask = (((j + pad_lanes) % seg) >= pad_lanes).astype(jnp.float32)[None, :]

    in_specs = [
        pl.BlockSpec((g_pack, c0_pad, t_pad), lambda i: (i, 0, 0)),
        pl.BlockSpec(mask.shape, lambda i: (0, 0)),
    ]
    for a in flat_args:
        # TODO(synk): pipeline_mode=pl.Buffered(1) would single-buffer these
        # constant-index weights and halve their VMEM footprint.
        in_specs.append(pl.BlockSpec(a.shape, lambda i: (0, 0)))
    out_specs = pl.BlockSpec((g_pack, c_last_pad, t_pad), lambda i: (i, 0, 0))

    kernel = functools.partial(
        _fused_tcn_kernel, layer_cfgs=tuple(layer_cfgs), ksize=K,
        t_pad=t_pad, pad_lanes=pad_lanes, g_pack=g_pack)

    # Cost estimate + shape-derived VMEM limit.
    flops = 0
    for (ci, co, d, ds) in layer_cfgs:
        flops += 2 * n_groups * Wa * (K * ci * co + K * co * co
                                      + (ci * co if ds else 0))
    w_bytes = sum(int(a.size) * a.dtype.itemsize for a in flat_args)
    bytes_accessed = (int(xp.size) * xp.dtype.itemsize
                      + b_pad * c_last_pad * t_pad * 4
                      + w_bytes + int(mask.size) * 4)

    scratch_bytes = 2 * c_max_pad * W * act_bytes
    io_block_bytes = 2 * (g_pack * c0_pad * t_pad * act_bytes
                          + g_pack * c_last_pad * t_pad * 4)   # double-buffered
    vmem_needed = (scratch_bytes + io_block_bytes + 2 * w_bytes
                   + 2 * int(mask.size) * 4 + (4 << 20))       # headroom
    try:
        vmem_cap = int(pltpu.get_tpu_info().vmem_capacity_bytes) * 3 // 4
    except Exception:  # info query unavailable: assume the smallest (v7x) VMEM
        vmem_cap = 48 << 20
    vmem_limit = int(min(max(vmem_needed, 32 << 20), max(vmem_cap, 32 << 20)))

    out = pl.pallas_call(
        kernel,
        out_shape=jax.ShapeDtypeStruct((b_pad, c_last_pad, t_pad), jnp.float32),
        grid=(n_groups,),
        in_specs=in_specs,
        out_specs=out_specs,
        scratch_shapes=[
            pltpu.VMEM((c_max_pad, W), mxu_dtype),
            pltpu.VMEM((c_max_pad, W), mxu_dtype),
        ],
        compiler_params=pltpu.CompilerParams(
            dimension_semantics=("parallel",),
            vmem_limit_bytes=vmem_limit),
        cost_estimate=pl.CostEstimate(flops=flops, transcendentals=0,
                                      bytes_accessed=bytes_accessed),
    )(xp, mask, *flat_args)

    return out[:B, :c_last, :T]


# -----------------------------------------------------------------------------
# Parameter construction (weight_norm folded, eps-guarded, in plain JAX glue).
# -----------------------------------------------------------------------------
def _weight_norm_effective(v, g, eps=1e-12):
    norm = jnp.sqrt(jnp.sum(v * v, axis=tuple(range(1, v.ndim)), keepdims=True))
    return g * v / jnp.maximum(norm, eps)


def init_tcn_params(key, num_inputs, num_channels, kernel_size):
    params = []
    c_in = num_inputs
    for i, c_out in enumerate(num_channels):
        key, k1, k2, k3, k4, k5, k6 = jax.random.split(key, 7)
        v1 = 0.01 * jax.random.normal(k1, (c_out, c_in, kernel_size), jnp.float32)
        v2 = 0.01 * jax.random.normal(k2, (c_out, c_out, kernel_size), jnp.float32)
        # weight_norm init: g = ||v||, so the effective weight equals v.
        g1 = jnp.sqrt(jnp.sum(v1 * v1, axis=(1, 2), keepdims=True))
        g2 = jnp.sqrt(jnp.sum(v2 * v2, axis=(1, 2), keepdims=True))
        w1 = _weight_norm_effective(v1, g1)
        w2 = _weight_norm_effective(v2, g2)
        b1 = 0.05 * jax.random.normal(k3, (c_out,), jnp.float32)
        b2 = 0.05 * jax.random.normal(k4, (c_out,), jnp.float32)
        if c_in != c_out:
            wd = 0.01 * jax.random.normal(k5, (c_out, c_in), jnp.float32)
            bd = 0.05 * jax.random.normal(k6, (c_out,), jnp.float32)
        else:
            wd, bd = None, None
        params.append(dict(w1=w1, b1=b1, w2=w2, b2=b2, wd=wd, bd=bd,
                           dilation=2 ** i))
        c_in = c_out
    return params


# -----------------------------------------------------------------------------
# Plain-JAX reference mirroring the kernel numerics: bf16 MXU operands and
# bf16 inter-layer activations, f32 accumulation / bias / relu / residual.
# -----------------------------------------------------------------------------
def _ref_causal_conv(x_m, w, b, dilation, mxu_dtype):
    # x_m: (B, C_in, T) already in mxu_dtype; w: (C_out, C_in, K); b: (C_out,)
    T = x_m.shape[2]
    K = w.shape[2]
    wm = w.astype(mxu_dtype)
    out = jnp.zeros((x_m.shape[0], w.shape[0], T), jnp.float32)
    for k in range(K):
        shift = (K - 1 - k) * dilation
        xs = jnp.pad(x_m, ((0, 0), (0, 0), (shift, 0)))[:, :, :T]
        out = out + jnp.einsum("oi,bit->bot", wm[:, :, k], xs,
                               preferred_element_type=jnp.float32)
    return out + b[None, :, None]


def temporal_conv_net_ref(x, params, kernel_size, mxu_dtype=jnp.bfloat16):
    x_m = x.astype(mxu_dtype)
    out = None
    for p in params:
        h1 = jax.nn.relu(_ref_causal_conv(x_m, p["w1"], p["b1"],
                                          p["dilation"], mxu_dtype))
        h2 = jax.nn.relu(_ref_causal_conv(h1.astype(mxu_dtype), p["w2"], p["b2"],
                                          p["dilation"], mxu_dtype))
        if p["wd"] is not None:
            res = jnp.einsum("oi,bit->bot", p["wd"].astype(mxu_dtype), x_m,
                             preferred_element_type=jnp.float32) \
                  + p["bd"][None, :, None]
        else:
            res = x_m.astype(jnp.float32)
        out = jax.nn.relu(h2 + res)
        x_m = out.astype(mxu_dtype)      # bf16 hand-off to the next block
    return out


# -----------------------------------------------------------------------------
if __name__ == "__main__":
    key = jax.random.PRNGKey(0)
    kx, kp = jax.random.split(key)

    # Small shapes consistent with the module: batch=2, num_inputs=4, seq=16.
    B, num_inputs, T = 2, 4, 16
    num_channels = [8, 8, 16]
    kernel_size = 2

    x = jax.random.normal(kx, (B, num_inputs, T), jnp.float32)
    params = init_tcn_params(kp, num_inputs, num_channels, kernel_size)

    out = jax.block_until_ready(temporal_conv_net(x, params, kernel_size))
    ref = jax.block_until_ready(temporal_conv_net_ref(x, params, kernel_size))

    assert out.shape == (B, num_channels[-1], T), out.shape
    max_err = float(jnp.max(jnp.abs(out - ref)))
    assert jnp.allclose(out, ref, atol=2e-3, rtol=2e-3), max_err

    print("KERNEL_OK")
</pallas_src>

<mosaic_0001>
module attributes {stable_mosaic.version = 11 : i64} {
  func.func @_fused_tcn_kernel(%arg0: i32, %arg1: memref<2x8x128xbf16, #tpu.memory_space<vmem>>, %arg2: memref<1x384xf32, #tpu.memory_space<vmem>>, %arg3: memref<8x16xbf16, #tpu.memory_space<vmem>>, %arg4: memref<8x1xf32, #tpu.memory_space<vmem>>, %arg5: memref<8x16xbf16, #tpu.memory_space<vmem>>, %arg6: memref<8x1xf32, #tpu.memory_space<vmem>>, %arg7: memref<8x8xbf16, #tpu.memory_space<vmem>>, %arg8: memref<8x1xf32, #tpu.memory_space<vmem>>, %arg9: memref<8x16xbf16, #tpu.memory_space<vmem>>, %arg10: memref<8x1xf32, #tpu.memory_space<vmem>>, %arg11: memref<8x16xbf16, #tpu.memory_space<vmem>>, %arg12: memref<8x1xf32, #tpu.memory_space<vmem>>, %arg13: memref<16x16xbf16, #tpu.memory_space<vmem>>, %arg14: memref<16x1xf32, #tpu.memory_space<vmem>>, %arg15: memref<16x32xbf16, #tpu.memory_space<vmem>>, %arg16: memref<16x1xf32, #tpu.memory_space<vmem>>, %arg17: memref<16x8xbf16, #tpu.memory_space<vmem>>, %arg18: memref<16x1xf32, #tpu.memory_space<vmem>>, %arg19: memref<2x16x128xf32, #tpu.memory_space<vmem>>, %arg20: memref<16x512xbf16, #tpu.memory_space<vmem>>, %arg21: memref<16x512xbf16, #tpu.memory_space<vmem>>) attributes {dimension_semantics = [#tpu.dimension_semantics<parallel>], iteration_bounds = array<i64: 1>, scalar_prefetch = 0 : i64, scratch_operands = 2 : i64, tpu.core_type = #tpu.core_type<tc>, window_params = [{transform_indices = @transform_0, window_bounds = array<i64: 2, 8, 128>}, {pipeline_mode = #tpu.pipeline_mode<synchronous>, transform_indices = @transform_1, window_bounds = array<i64: 1, 384>}, {pipeline_mode = #tpu.pipeline_mode<synchronous>, transform_indices = @transform_2, window_bounds = array<i64: 8, 16>}, {pipeline_mode = #tpu.pipeline_mode<synchronous>, transform_indices = @transform_3, window_bounds = array<i64: 8, 1>}, {pipeline_mode = #tpu.pipeline_mode<synchronous>, transform_indices = @transform_4, window_bounds = array<i64: 8, 16>}, {pipeline_mode = #tpu.pipeline_mode<synchronous>, transform_indices = @transform_5, window_bounds = array<i64: 8, 1>}, {pipeline_mode = #tpu.pipeline_mode<synchronous>, transform_indices = @transform_6, window_bounds = array<i64: 8, 8>}, {pipeline_mode = #tpu.pipeline_mode<synchronous>, transform_indices = @transform_7, window_bounds = array<i64: 8, 1>}, {pipeline_mode = #tpu.pipeline_mode<synchronous>, transform_indices = @transform_8, window_bounds = array<i64: 8, 16>}, {pipeline_mode = #tpu.pipeline_mode<synchronous>, transform_indices = @transform_9, window_bounds = array<i64: 8, 1>}, {pipeline_mode = #tpu.pipeline_mode<synchronous>, transform_indices = @transform_10, window_bounds = array<i64: 8, 16>}, {pipeline_mode = #tpu.pipeline_mode<synchronous>, transform_indices = @transform_11, window_bounds = array<i64: 8, 1>}, {pipeline_mode = #tpu.pipeline_mode<synchronous>, transform_indices = @transform_12, window_bounds = array<i64: 16, 16>}, {pipeline_mode = #tpu.pipeline_mode<synchronous>, transform_indices = @transform_13, window_bounds = array<i64: 16, 1>}, {pipeline_mode = #tpu.pipeline_mode<synchronous>, transform_indices = @transform_14, window_bounds = array<i64: 16, 32>}, {pipeline_mode = #tpu.pipeline_mode<synchronous>, transform_indices = @transform_15, window_bounds = array<i64: 16, 1>}, {pipeline_mode = #tpu.pipeline_mode<synchronous>, transform_indices = @transform_16, window_bounds = array<i64: 16, 8>}, {pipeline_mode = #tpu.pipeline_mode<synchronous>, transform_indices = @transform_17, window_bounds = array<i64: 16, 1>}, {transform_indices = @transform_18, window_bounds = array<i64: 2, 16, 128>}]} {
    %cst = arith.constant 0.000000e+00 : bf16
    %0 = vector.broadcast %cst : bf16 to vector<16x128xbf16>
    %c0 = arith.constant 0 : index
    %c0_0 = arith.constant 0 : index
    %1 = vector.load %arg20[%c0, %c0_0] : memref<16x512xbf16, #tpu.memory_space<vmem>>, vector<16x128xbf16>
    tpu.vector_store %arg20[%c0, %c0_0], %0 {strides = array<i32>} : memref<16x512xbf16, #tpu.memory_space<vmem>>, vector<16x128xbf16>,
    %c0_1 = arith.constant 0 : index
    %c0_2 = arith.constant 0 : index
    %2 = vector.load %arg21[%c0_1, %c0_2] : memref<16x512xbf16, #tpu.memory_space<vmem>>, vector<16x128xbf16>
    tpu.vector_store %arg21[%c0_1, %c0_2], %0 {strides = array<i32>} : memref<16x512xbf16, #tpu.memory_space<vmem>>, vector<16x128xbf16>,
    %c0_3 = arith.constant 0 : index
    %c256 = arith.constant 256 : index
    %3 = vector.load %arg20[%c0_3, %c256] : memref<16x512xbf16, #tpu.memory_space<vmem>>, vector<16x128xbf16>
    tpu.vector_store %arg20[%c0_3, %c256], %0 {strides = array<i32>} : memref<16x512xbf16, #tpu.memory_space<vmem>>, vector<16x128xbf16>,
    %c0_4 = arith.constant 0 : index
    %c256_5 = arith.constant 256 : index
    %4 = vector.load %arg21[%c0_4, %c256_5] : memref<16x512xbf16, #tpu.memory_space<vmem>>, vector<16x128xbf16>
    tpu.vector_store %arg21[%c0_4, %c256_5], %0 {strides = array<i32>} : memref<16x512xbf16, #tpu.memory_space<vmem>>, vector<16x128xbf16>,
    %c0_6 = arith.constant 0 : index
    %c0_7 = arith.constant 0 : index
    %c0_8 = arith.constant 0 : index
    %5 = vector.load %arg1[%c0_6, %c0_7, %c0_8] : memref<2x8x128xbf16, #tpu.memory_space<vmem>>, vector<1x8x128xbf16>
    %6 = vector.shape_cast %5 : vector<1x8x128xbf16> to vector<8x128xbf16>
    %c0_9 = arith.constant 0 : index
    %c128 = arith.constant 128 : index
    %7 = vector.load %arg20[%c0_9, %c128] : memref<16x512xbf16, #tpu.memory_space<vmem>>, vector<8x128xbf16>
    tpu.vector_store %arg20[%c0_9, %c128], %6 {strides = array<i32>} : memref<16x512xbf16, #tpu.memory_space<vmem>>, vector<8x128xbf16>,
    %c1 = arith.constant 1 : index
    %c0_10 = arith.constant 0 : index
    %c0_11 = arith.constant 0 : index
    %8 = vector.load %arg1[%c1, %c0_10, %c0_11] : memref<2x8x128xbf16, #tpu.memory_space<vmem>>, vector<1x8x128xbf16>
    %9 = vector.shape_cast %8 : vector<1x8x128xbf16> to vector<8x128xbf16>
    %c0_12 = arith.constant 0 : index
    %c384 = arith.constant 384 : index
    %10 = vector.load %arg20[%c0_12, %c384] : memref<16x512xbf16, #tpu.memory_space<vmem>>, vector<8x128xbf16>
    tpu.vector_store %arg20[%c0_12, %c384], %9 {strides = array<i32>} : memref<16x512xbf16, #tpu.memory_space<vmem>>, vector<8x128xbf16>,
    %c0_13 = arith.constant 0 : index
    %c0_14 = arith.constant 0 : index
    %11 = vector.load %arg2[%c0_13, %c0_14] : memref<1x384xf32, #tpu.memory_space<vmem>>, vector<1x384xf32>
    %c0_15 = arith.constant 0 : index
    %c128_16 = arith.constant 128 : index
    %12 = vector.load %arg20[%c0_15, %c128_16] : memref<16x512xbf16, #tpu.memory_space<vmem>>, vector<8x384xbf16>
    %c0_17 = arith.constant 0 : index
    %c127 = arith.constant 127 : index
    %13 = vector.load %arg20[%c0_17, %c127] : memref<16x512xbf16, #tpu.memory_space<vmem>>, vector<8x384xbf16>
    %14 = tpu.concatenate %13, %12 in 0 : vector<8x384xbf16>, vector<8x384xbf16> -> vector<16x384xbf16>
    %c0_18 = arith.constant 0 : index
    %c0_19 = arith.constant 0 : index
    %15 = vector.load %arg3[%c0_18, %c0_19] : memref<8x16xbf16, #tpu.memory_space<vmem>>, vector<8x16xbf16>
    %cst_20 = arith.constant dense<0.000000e+00> : vector<8x384xf32>
    %16 = tpu.matmul %15, %14, %cst_20 {dimension_numbers = #tpu.dot_dimension_numbers<[1], [0], [0], [1], [0, 0, 1, 1], [], []>} : vector<8x16xbf16>, vector<16x384xbf16>, vector<8x384xf32> -> vector<8x384xf32>
    %c0_21 = arith.constant 0 : index
    %c0_22 = arith.constant 0 : index
    %17 = vector.load %arg4[%c0_21, %c0_22] : memref<8x1xf32, #tpu.memory_space<vmem>>, vector<8x1xf32>
    %18 = vector.broadcast %17 : vector<8x1xf32> to vector<8x384xf32>
    %19 = arith.addf %16, %18 : vector<8x384xf32>
    %cst_23 = arith.constant 0.000000e+00 : f32
    %20 = vector.broadcast %cst_23 : f32 to vector<8x384xf32>
    %21 = arith.maximumf %19, %20 : vector<8x384xf32>
    %22 = vector.broadcast %11 : vector<1x384xf32> to vector<8x384xf32>
    %23 = arith.mulf %21, %22 : vector<8x384xf32>
    %24 = arith.truncf %23 : vector<8x384xf32> to vector<8x384xbf16>
    %c0_24 = arith.constant 0 : index
    %c128_25 = arith.constant 128 : index
    %25 = vector.load %arg21[%c0_24, %c128_25] : memref<16x512xbf16, #tpu.memory_space<vmem>>, vector<8x384xbf16>
    tpu.vector_store %arg21[%c0_24, %c128_25], %24 {strides = array<i32>} : memref<16x512xbf16, #tpu.memory_space<vmem>>, vector<8x384xbf16>,
    %c0_26 = arith.constant 0 : index
    %c127_27 = arith.constant 127 : index
    %26 = vector.load %arg21[%c0_26, %c127_27] : memref<16x512xbf16, #tpu.memory_space<vmem>>, vector<8x384xbf16>
    %27 = tpu.concatenate %26, %24 in 0 : vector<8x384xbf16>, vector<8x384xbf16> -> vector<16x384xbf16>
    %c0_28 = arith.constant 0 : index
    %c0_29 = arith.constant 0 : index
    %28 = vector.load %arg5[%c0_28, %c0_29] : memref<8x16xbf16, #tpu.memory_space<vmem>>, vector<8x16xbf16>
    %cst_30 = arith.constant dense<0.000000e+00> : vector<8x384xf32>
    %29 = tpu.matmul %28, %27, %cst_30 {dimension_numbers = #tpu.dot_dimension_numbers<[1], [0], [0], [1], [0, 0, 1, 1], [], []>} : vector<8x16xbf16>, vector<16x384xbf16>, vector<8x384xf32> -> vector<8x384xf32>
    %c0_31 = arith.constant 0 : index
    %c0_32 = arith.constant 0 : index
    %30 = vector.load %arg6[%c0_31, %c0_32] : memref<8x1xf32, #tpu.memory_space<vmem>>, vector<8x1xf32>
    %31 = vector.broadcast %30 : vector<8x1xf32> to vector<8x384xf32>
    %32 = arith.addf %29, %31 : vector<8x384xf32>
    %cst_33 = arith.constant 0.000000e+00 : f32
    %33 = vector.broadcast %cst_33 : f32 to vector<8x384xf32>
    %34 = arith.maximumf %32, %33 : vector<8x384xf32>
    %c0_34 = arith.constant 0 : index
    %c0_35 = arith.constant 0 : index
    %35 = vector.load %arg7[%c0_34, %c0_35] : memref<8x8xbf16, #tpu.memory_space<vmem>>, vector<8x8xbf16>
    %cst_36 = arith.constant dense<0.000000e+00> : vector<8x384xf32>
    %36 = tpu.matmul %35, %12, %cst_36 {dimension_numbers = #tpu.dot_dimension_numbers<[1], [0], [0], [1], [0, 0, 1, 1], [], []>} : vector<8x8xbf16>, vector<8x384xbf16>, vector<8x384xf32> -> vector<8x384xf32>
    %c0_37 = arith.constant 0 : index
    %c0_38 = arith.constant 0 : index
    %37 = vector.load %arg8[%c0_37, %c0_38] : memref<8x1xf32, #tpu.memory_space<vmem>>, vector<8x1xf32>
    %38 = vector.broadcast %37 : vector<8x1xf32> to vector<8x384xf32>
    %39 = arith.addf %36, %38 : vector<8x384xf32>
    %40 = arith.addf %34, %39 : vector<8x384xf32>
    %cst_39 = arith.constant 0.000000e+00 : f32
    %41 = vector.broadcast %cst_39 : f32 to vector<8x384xf32>
    %42 = arith.maximumf %40, %41 : vector<8x384xf32>
    %43 = vector.broadcast %11 : vector<1x384xf32> to vector<8x384xf32>
    %44 = arith.mulf %42, %43 : vector<8x384xf32>
    %45 = arith.truncf %44 : vector<8x384xf32> to vector<8x384xbf16>
    %c0_40 = arith.constant 0 : index
    %c128_41 = arith.constant 128 : index
    %46 = vector.load %arg20[%c0_40, %c128_41] : memref<16x512xbf16, #tpu.memory_space<vmem>>, vector<8x384xbf16>
    tpu.vector_store %arg20[%c0_40, %c128_41], %45 {strides = array<i32>} : memref<16x512xbf16, #tpu.memory_space<vmem>>, vector<8x384xbf16>,
    %c0_42 = arith.constant 0 : index
    %c126 = arith.constant 126 : index
    %47 = vector.load %arg20[%c0_42, %c126] : memref<16x512xbf16, #tpu.memory_space<vmem>>, vector<8x384xbf16>
    %48 = tpu.concatenate %47, %45 in 0 : vector<8x384xbf16>, vector<8x384xbf16> -> vector<16x384xbf16>
    %c0_43 = arith.constant 0 : index
    %c0_44 = arith.constant 0 : index
    %49 = vector.load %arg9[%c0_43, %c0_44] : memref<8x16xbf16, #tpu.memory_space<vmem>>, vector<8x16xbf16>
    %cst_45 = arith.constant dense<0.000000e+00> : vector<8x384xf32>
    %50 = tpu.matmul %49, %48, %cst_45 {dimension_numbers = #tpu.dot_dimension_numbers<[1], [0], [0], [1], [0, 0, 1, 1], [], []>} : vector<8x16xbf16>, vector<16x384xbf16>, vector<8x384xf32> -> vector<8x384xf32>
    %c0_46 = arith.constant 0 : index
    %c0_47 = arith.constant 0 : index
    %51 = vector.load %arg10[%c0_46, %c0_47] : memref<8x1xf32, #tpu.memory_space<vmem>>, vector<8x1xf32>
    %52 = vector.broadcast %51 : vector<8x1xf32> to vector<8x384xf32>
    %53 = arith.addf %50, %52 : vector<8x384xf32>
    %cst_48 = arith.constant 0.000000e+00 : f32
    %54 = vector.broadcast %cst_48 : f32 to vector<8x384xf32>
    %55 = arith.maximumf %53, %54 : vector<8x384xf32>
    %56 = vector.broadcast %11 : vector<1x384xf32> to vector<8x384xf32>
    %57 = arith.mulf %55, %56 : vector<8x384xf32>
    %58 = arith.truncf %57 : vector<8x384xf32> to vector<8x384xbf16>
    %c0_49 = arith.constant 0 : index
    %c128_50 = arith.constant 128 : index
    %59 = vector.load %arg21[%c0_49, %c128_50] : memref<16x512xbf16, #tpu.memory_space<vmem>>, vector<8x384xbf16>
    tpu.vector_store %arg21[%c0_49, %c128_50], %58 {strides = array<i32>} : memref<16x512xbf16, #tpu.memory_space<vmem>>, vector<8x384xbf16>,
    %c0_51 = arith.constant 0 : index
    %c126_52 = arith.constant 126 : index
    %60 = vector.load %arg21[%c0_51, %c126_52] : memref<16x512xbf16, #tpu.memory_space<vmem>>, vector<8x384xbf16>
    %61 = tpu.concatenate %60, %58 in 0 : vector<8x384xbf16>, vector<8x384xbf16> -> vector<16x384xbf16>
    %c0_53 = arith.constant 0 : index
    %c0_54 = arith.constant 0 : index
    %62 = vector.load %arg11[%c0_53, %c0_54] : memref<8x16xbf16, #tpu.memory_space<vmem>>, vector<8x16xbf16>
    %cst_55 = arith.constant dense<0.000000e+00> : vector<8x384xf32>
    %63 = tpu.matmul %62, %61, %cst_55 {dimension_numbers = #tpu.dot_dimension_numbers<[1], [0], [0], [1], [0, 0, 1, 1], [], []>} : vector<8x16xbf16>, vector<16x384xbf16>, vector<8x384xf32> -> vector<8x384xf32>
    %c0_56 = arith.constant 0 : index
    %c0_57 = arith.constant 0 : index
    %64 = vector.load %arg12[%c0_56, %c0_57] : memref<8x1xf32, #tpu.memory_space<vmem>>, vector<8x1xf32>
    %65 = vector.broadcast %64 : vector<8x1xf32> to vector<8x384xf32>
    %66 = arith.addf %63, %65 : vector<8x384xf32>
    %cst_58 = arith.constant 0.000000e+00 : f32
    %67 = vector.broadcast %cst_58 : f32 to vector<8x384xf32>
    %68 = arith.maximumf %66, %67 : vector<8x384xf32>
    %69 = arith.extf %45 : vector<8x384xbf16> to vector<8x384xf32>
    %70 = arith.addf %68, %69 : vector<8x384xf32>
    %cst_59 = arith.constant 0.000000e+00 : f32
    %71 = vector.broadcast %cst_59 : f32 to vector<8x384xf32>
    %72 = arith.maximumf %70, %71 : vector<8x384xf32>
    %73 = vector.broadcast %11 : vector<1x384xf32> to vector<8x384xf32>
    %74 = arith.mulf %72, %73 : vector<8x384xf32>
    %75 = arith.truncf %74 : vector<8x384xf32> to vector<8x384xbf16>
    %c0_60 = arith.constant 0 : index
    %c128_61 = arith.constant 128 : index
    %76 = vector.load %arg20[%c0_60, %c128_61] : memref<16x512xbf16, #tpu.memory_space<vmem>>, vector<8x384xbf16>
    tpu.vector_store %arg20[%c0_60, %c128_61], %75 {strides = array<i32>} : memref<16x512xbf16, #tpu.memory_space<vmem>>, vector<8x384xbf16>,
    %c0_62 = arith.constant 0 : index
    %c124 = arith.constant 124 : index
    %77 = vector.load %arg20[%c0_62, %c124] : memref<16x512xbf16, #tpu.memory_space<vmem>>, vector<8x384xbf16>
    %78 = tpu.concatenate %77, %75 in 0 : vector<8x384xbf16>, vector<8x384xbf16> -> vector<16x384xbf16>
    %c0_63 = arith.constant 0 : index
    %c0_64 = arith.constant 0 : index
    %79 = vector.load %arg13[%c0_63, %c0_64] : memref<16x16xbf16, #tpu.memory_space<vmem>>, vector<16x16xbf16>
    %cst_65 = arith.constant dense<0.000000e+00> : vector<16x384xf32>
    %80 = tpu.matmul %79, %78, %cst_65 {dimension_numbers = #tpu.dot_dimension_numbers<[1], [0], [0], [1], [0, 0, 1, 1], [], []>} : vector<16x16xbf16>, vector<16x384xbf16>, vector<16x384xf32> -> vector<16x384xf32>
    %c0_66 = arith.constant 0 : index
    %c0_67 = arith.constant 0 : index
    %81 = vector.load %arg14[%c0_66, %c0_67] : memref<16x1xf32, #tpu.memory_space<vmem>>, vector<16x1xf32>
    %82 = vector.broadcast %81 : vector<16x1xf32> to vector<16x384xf32>
    %83 = arith.addf %80, %82 : vector<16x384xf32>
    %cst_68 = arith.constant 0.000000e+00 : f32
    %84 = vector.broadcast %cst_68 : f32 to vector<16x384xf32>
    %85 = arith.maximumf %83, %84 : vector<16x384xf32>
    %86 = vector.broadcast %11 : vector<1x384xf32> to vector<16x384xf32>
    %87 = arith.mulf %85, %86 : vector<16x384xf32>
    %88 = arith.truncf %87 : vector<16x384xf32> to vector<16x384xbf16>
    %c0_69 = arith.constant 0 : index
    %c128_70 = arith.constant 128 : index
    %89 = vector.load %arg21[%c0_69, %c128_70] : memref<16x512xbf16, #tpu.memory_space<vmem>>, vector<16x384xbf16>
    tpu.vector_store %arg21[%c0_69, %c128_70], %88 {strides = array<i32>} : memref<16x512xbf16, #tpu.memory_space<vmem>>, vector<16x384xbf16>,
    %c0_71 = arith.constant 0 : index
    %c124_72 = arith.constant 124 : index
    %90 = vector.load %arg21[%c0_71, %c124_72] : memref<16x512xbf16, #tpu.memory_space<vmem>>, vector<16x384xbf16>
    %91 = tpu.concatenate %90, %88 in 0 : vector<16x384xbf16>, vector<16x384xbf16> -> vector<32x384xbf16>
    %c0_73 = arith.constant 0 : index
    %c0_74 = arith.constant 0 : index
    %92 = vector.load %arg15[%c0_73, %c0_74] : memref<16x32xbf16, #tpu.memory_space<vmem>>, vector<16x32xbf16>
    %cst_75 = arith.constant dense<0.000000e+00> : vector<16x384xf32>
    %93 = tpu.matmul %92, %91, %cst_75 {dimension_numbers = #tpu.dot_dimension_numbers<[1], [0], [0], [1], [0, 0, 1, 1], [], []>} : vector<16x32xbf16>, vector<32x384xbf16>, vector<16x384xf32> -> vector<16x384xf32>
    %c0_76 = arith.constant 0 : index
    %c0_77 = arith.constant 0 : index
    %94 = vector.load %arg16[%c0_76, %c0_77] : memref<16x1xf32, #tpu.memory_space<vmem>>, vector<16x1xf32>
    %95 = vector.broadcast %94 : vector<16x1xf32> to vector<16x384xf32>
    %96 = arith.addf %93, %95 : vector<16x384xf32>
    %cst_78 = arith.constant 0.000000e+00 : f32
    %97 = vector.broadcast %cst_78 : f32 to vector<16x384xf32>
    %98 = arith.maximumf %96, %97 : vector<16x384xf32>
    %c0_79 = arith.constant 0 : index
    %c0_80 = arith.constant 0 : index
    %99 = vector.load %arg17[%c0_79, %c0_80] : memref<16x8xbf16, #tpu.memory_space<vmem>>, vector<16x8xbf16>
    %cst_81 = arith.constant dense<0.000000e+00> : vector<16x384xf32>
    %100 = tpu.matmul %99, %75, %cst_81 {dimension_numbers = #tpu.dot_dimension_numbers<[1], [0], [0], [1], [0, 0, 1, 1], [], []>} : vector<16x8xbf16>, vector<8x384xbf16>, vector<16x384xf32> -> vector<16x384xf32>
    %c0_82 = arith.constant 0 : index
    %c0_83 = arith.constant 0 : index
    %101 = vector.load %arg18[%c0_82, %c0_83] : memref<16x1xf32, #tpu.memory_space<vmem>>, vector<16x1xf32>
    %102 = vector.broadcast %101 : vector<16x1xf32> to vector<16x384xf32>
    %103 = arith.addf %100, %102 : vector<16x384xf32>
    %104 = arith.addf %98, %103 : vector<16x384xf32>
    %cst_84 = arith.constant 0.000000e+00 : f32
    %105 = vector.broadcast %cst_84 : f32 to vector<16x384xf32>
    %106 = arith.maximumf %104, %105 : vector<16x384xf32>
    %107 = vector.broadcast %11 : vector<1x384xf32> to vector<16x384xf32>
    %108 = arith.mulf %106, %107 : vector<16x384xf32>
    %109 = arith.truncf %108 : vector<16x384xf32> to vector<16x384xbf16>
    %c0_85 = arith.constant 0 : index
    %c128_86 = arith.constant 128 : index
    %110 = vector.load %arg20[%c0_85, %c128_86] : memref<16x512xbf16, #tpu.memory_space<vmem>>, vector<16x384xbf16>
    tpu.vector_store %arg20[%c0_85, %c128_86], %109 {strides = array<i32>} : memref<16x512xbf16, #tpu.memory_space<vmem>>, vector<16x384xbf16>,
    %111 = vector.extract_strided_slice %108 {offsets = [0, 0], sizes = [16, 128], strides = [1, 1]} : vector<16x384xf32> to vector<16x128xf32>
    %c0_87 = arith.constant 0 : index
    %c0_88 = arith.constant 0 : index
    %c0_89 = arith.constant 0 : index
    %112 = vector.load %arg19[%c0_87, %c0_88, %c0_89] : memref<2x16x128xf32, #tpu.memory_space<vmem>>, vector<1x16x128xf32>
    %113 = vector.shape_cast %112 : vector<1x16x128xf32> to vector<16x128xf32>
    %114 = vector.shape_cast %111 : vector<16x128xf32> to vector<1x16x128xf32>
    tpu.vector_store %arg19[%c0_87, %c0_88, %c0_89], %114 {strides = array<i32>} : memref<2x16x128xf32, #tpu.memory_space<vmem>>, vector<1x16x128xf32>,
    %115 = vector.extract_strided_slice %108 {offsets = [0, 256], sizes = [16, 128], strides = [1, 1]} : vector<16x384xf32> to vector<16x128xf32>
    %c1_90 = arith.constant 1 : index
    %c0_91 = arith.constant 0 : index
    %c0_92 = arith.constant 0 : index
    %116 = vector.load %arg19[%c1_90, %c0_91, %c0_92] : memref<2x16x128xf32, #tpu.memory_space<vmem>>, vector<1x16x128xf32>
    %117 = vector.shape_cast %116 : vector<1x16x128xf32> to vector<16x128xf32>
    %118 = vector.shape_cast %115 : vector<16x128xf32> to vector<1x16x128xf32>
    tpu.vector_store %arg19[%c1_90, %c0_91, %c0_92], %118 {strides = array<i32>} : memref<2x16x128xf32, #tpu.memory_space<vmem>>, vector<1x16x128xf32>,
    return
  }
  func.func @transform_0(%arg0: i32) -> (i32, i32, i32) {
    %c0_i32 = arith.constant 0 : i32
    %c0_i32_0 = arith.constant 0 : i32
    %c0_i32_1 = arith.constant 0 : i32
    return %arg0, %c0_i32, %c0_i32_0 : i32, i32, i32
  }
  func.func @transform_1(%arg0: i32) -> (i32, i32) {
    %c0_i32 = arith.constant 0 : i32
    %c0_i32_0 = arith.constant 0 : i32
    %c0_i32_1 = arith.constant 0 : i32
    return %c0_i32, %c0_i32_0 : i32, i32
  }
  func.func @transform_2(%arg0: i32) -> (i32, i32) {
    %c0_i32 = arith.constant 0 : i32
    %c0_i32_0 = arith.constant 0 : i32
    %c0_i32_1 = arith.constant 0 : i32
    return %c0_i32, %c0_i32_0 : i32, i32
  }
  func.func @transform_3(%arg0: i32) -> (i32, i32) {
    %c0_i32 = arith.constant 0 : i32
    %c0_i32_0 = arith.constant 0 : i32
    %c0_i32_1 = arith.constant 0 : i32
    return %c0_i32, %c0_i32_0 : i32, i32
  }
  func.func @transform_4(%arg0: i32) -> (i32, i32) {
    %c0_i32 = arith.constant 0 : i32
    %c0_i32_0 = arith.constant 0 : i32
    %c0_i32_1 = arith.constant 0 : i32
    return %c0_i32, %c0_i32_0 : i32, i32
  }
  func.func @transform_5(%arg0: i32) -> (i32, i32) {
    %c0_i32 = arith.constant 0 : i32
    %c0_i32_0 = arith.constant 0 : i32
    %c0_i32_1 = arith.constant 0 : i32
    return %c0_i32, %c0_i32_0 : i32, i32
  }
  func.func @transform_6(%arg0: i32) -> (i32, i32) {
    %c0_i32 = arith.constant 0 : i32
    %c0_i32_0 = arith.constant 0 : i32
    %c0_i32_1 = arith.constant 0 : i32
    return %c0_i32, %c0_i32_0 : i32, i32
  }
  func.func @transform_7(%arg0: i32) -> (i32, i32) {
    %c0_i32 = arith.constant 0 : i32
    %c0_i32_0 = arith.constant 0 : i32
    %c0_i32_1 = arith.constant 0 : i32
    return %c0_i32, %c0_i32_0 : i32, i32
  }
  func.func @transform_8(%arg0: i32) -> (i32, i32) {
    %c0_i32 = arith.constant 0 : i32
    %c0_i32_0 = arith.constant 0 : i32
    %c0_i32_1 = arith.constant 0 : i32
    return %c0_i32, %c0_i32_0 : i32, i32
  }
  func.func @transform_9(%arg0: i32) -> (i32, i32) {
    %c0_i32 = arith.constant 0 : i32
    %c0_i32_0 = arith.constant 0 : i32
    %c0_i32_1 = arith.constant 0 : i32
    return %c0_i32, %c0_i32_0 : i32, i32
  }
  func.func @transform_10(%arg0: i32) -> (i32, i32) {
    %c0_i32 = arith.constant 0 : i32
    %c0_i32_0 = arith.constant 0 : i32
    %c0_i32_1 = arith.constant 0 : i32
    return %c0_i32, %c0_i32_0 : i32, i32
  }
  func.func @transform_11(%arg0: i32) -> (i32, i32) {
    %c0_i32 = arith.constant 0 : i32
    %c0_i32_0 = arith.constant 0 : i32
    %c0_i32_1 = arith.constant 0 : i32
    return %c0_i32, %c0_i32_0 : i32, i32
  }
  func.func @transform_12(%arg0: i32) -> (i32, i32) {
    %c0_i32 = arith.constant 0 : i32
    %c0_i32_0 = arith.constant 0 : i32
    %c0_i32_1 = arith.constant 0 : i32
    return %c0_i32, %c0_i32_0 : i32, i32
  }
  func.func @transform_13(%arg0: i32) -> (i32, i32) {
    %c0_i32 = arith.constant 0 : i32
    %c0_i32_0 = arith.constant 0 : i32
    %c0_i32_1 = arith.constant 0 : i32
    return %c0_i32, %c0_i32_0 : i32, i32
  }
  func.func @transform_14(%arg0: i32) -> (i32, i32) {
    %c0_i32 = arith.constant 0 : i32
    %c0_i32_0 = arith.constant 0 : i32
    %c0_i32_1 = arith.constant 0 : i32
    return %c0_i32, %c0_i32_0 : i32, i32
  }
  func.func @transform_15(%arg0: i32) -> (i32, i32) {
    %c0_i32 = arith.constant 0 : i32
    %c0_i32_0 = arith.constant 0 : i32
    %c0_i32_1 = arith.constant 0 : i32
    return %c0_i32, %c0_i32_0 : i32, i32
  }
  func.func @transform_16(%arg0: i32) -> (i32, i32) {
    %c0_i32 = arith.constant 0 : i32
    %c0_i32_0 = arith.constant 0 : i32
    %c0_i32_1 = arith.constant 0 : i32
    return %c0_i32, %c0_i32_0 : i32, i32
  }
  func.func @transform_17(%arg0: i32) -> (i32, i32) {
    %c0_i32 = arith.constant 0 : i32
    %c0_i32_0 = arith.constant 0 : i32
    %c0_i32_1 = arith.constant 0 : i32
    return %c0_i32, %c0_i32_0 : i32, i32
  }
  func.func @transform_18(%arg0: i32) -> (i32, i32, i32) {
    %c0_i32 = arith.constant 0 : i32
    %c0_i32_0 = arith.constant 0 : i32
    %c0_i32_1 = arith.constant 0 : i32
    return %arg0, %c0_i32, %c0_i32_0 : i32, i32, i32
  }
}

</mosaic_0001>

<llo_original>
// kernel: tpu_custom_call.1
$region0: #{tpu_custom_call.1}
  #allocation0 [shape = 'u32[]', space=smem, size = 0x4, offset = 0x4, fixed_abs, tag = 'smem constant byte address 0x4 - core index']
  #allocation1 [shape = 'u32[72,128]{1,0:T(1,128)}', space=vmem, size = 0x9000, scoped, tag = 'internal scratch']
  #allocation2 [shape = 'bf16[16,512]{1,0:T(8,128)(2,1)}', space=vmem, size = 0x4000, scoped, tag = 'scratch operand']
  #allocation3 [shape = 'bf16[16,512]{1,0:T(8,128)(2,1)}', space=vmem, size = 0x4000, scoped, tag = 'scratch operand']
  %s0 = inlined_call_operand.vmem [shape: bf16[2,8,128], index: 0, kind: input, shape index: {}]
  %s1 = inlined_call_operand.vmem [shape: f32[1,384], index: 1, kind: input, shape index: {}]
  %s2 = inlined_call_operand.vmem [shape: bf16[8,16], index: 2, kind: input, shape index: {}]
  %s3 = inlined_call_operand.vmem [shape: f32[8,1], index: 3, kind: input, shape index: {}]
  %s4 = inlined_call_operand.vmem [shape: bf16[8,16], index: 4, kind: input, shape index: {}]
  %s5 = inlined_call_operand.vmem [shape: f32[8,1], index: 5, kind: input, shape index: {}]
  %s6 = inlined_call_operand.vmem [shape: bf16[8,8], index: 6, kind: input, shape index: {}]
  %s7 = inlined_call_operand.vmem [shape: f32[8,1], index: 7, kind: input, shape index: {}]
  %s8 = inlined_call_operand.vmem [shape: bf16[8,16], index: 8, kind: input, shape index: {}]
  %s9 = inlined_call_operand.vmem [shape: f32[8,1], index: 9, kind: input, shape index: {}]
  %s10 = inlined_call_operand.vmem [shape: bf16[8,16], index: 10, kind: input, shape index: {}]
  %s11 = inlined_call_operand.vmem [shape: f32[8,1], index: 11, kind: input, shape index: {}]
  %s12 = inlined_call_operand.vmem [shape: bf16[16,16], index: 12, kind: input, shape index: {}]
  %s13 = inlined_call_operand.vmem [shape: f32[16,1], index: 13, kind: input, shape index: {}]
  %s14 = inlined_call_operand.vmem [shape: bf16[16,32], index: 14, kind: input, shape index: {}]
  %s15 = inlined_call_operand.vmem [shape: f32[16,1], index: 15, kind: input, shape index: {}]
  %s16 = inlined_call_operand.vmem [shape: bf16[16,8], index: 16, kind: input, shape index: {}]
  %s17 = inlined_call_operand.vmem [shape: f32[16,1], index: 17, kind: input, shape index: {}]
  %s18 = inlined_call_operand.hbm [shape: f32[2,16,128], index: 18, kind: output, shape index: {}]
  %s19 = sld [smem:[#allocation0]]
  $region82: #{tpu_custom_call.1} parent=0
    _
  %s21 = ssub.s32 1, %s19
  %s22 = scalar_select 0, %s21, %s19
  $region1: #{tpu_custom_call.1} parent=0
    #allocation4 [shape = 'u8[16384]{0}', space=vmem, size = 0x4000, scoped, tag = 'output window, operand 0, single buffered']
    #allocation5 [shape = 's32[1]{0}', space=sflag, size = 0x4, scoped, tag = 'scoped memory for tpu_custom_call.1']
    %23 = vsyncpa [#allocation5], 0
    // Predicated region
    $region2: #{tpu_custom_call.1} parent=1 // pred_check
      _
    $region3: #{tpu_custom_call.1} parent=1 // pred_check_branch
      %25 = sbr.rel (0) target = $region5
    $region4: #{tpu_custom_call.1} parent=1 // pred_region
      _
    $region5: #{tpu_custom_call.1} parent=1 // pred_fallthru
      _
    // Predicated region
    $region6: #{tpu_custom_call.1} parent=1 // pred_check
      _
    $region7: #{tpu_custom_call.1} parent=1 // pred_check_branch
      %27 = sbr.rel (0) target = $region9
    $region8: #{tpu_custom_call.1} parent=1 // pred_region
      _
    $region9: #{tpu_custom_call.1} parent=1 // pred_fallthru
      _
    // Predicated region
    $region10: #{tpu_custom_call.1} parent=1 // pred_check
      _
    $region11: #{tpu_custom_call.1} parent=1 // pred_check_branch
      %29 = sbr.rel (0) target = $region13
    $region12: #{tpu_custom_call.1} parent=1 // pred_region
      _
    $region13: #{tpu_custom_call.1} parent=1 // pred_fallthru
      _
    // Predicated region
    $region14: #{tpu_custom_call.1} parent=1 // pred_check
      _
    $region15: #{tpu_custom_call.1} parent=1 // pred_check_branch
      %31 = sbr.rel (0) target = $region17
    $region16: #{tpu_custom_call.1} parent=1 // pred_region
      _
    $region17: #{tpu_custom_call.1} parent=1 // pred_fallthru
      _
    // Predicated region
    $region18: #{tpu_custom_call.1} parent=1 // pred_check
      _
    $region19: #{tpu_custom_call.1} parent=1 // pred_check_branch
      %33 = sbr.rel (0) target = $region21
    $region20: #{tpu_custom_call.1} parent=1 // pred_region
      _
    $region21: #{tpu_custom_call.1} parent=1 // pred_fallthru
      _
    // Predicated region
    $region22: #{tpu_custom_call.1} parent=1 // pred_check
      _
    $region23: #{tpu_custom_call.1} parent=1 // pred_check_branch
      %35 = sbr.rel (0) target = $region25
    $region24: #{tpu_custom_call.1} parent=1 // pred_region
      _
    $region25: #{tpu_custom_call.1} parent=1 // pred_fallthru
      _
    // Predicated region
    $region26: #{tpu_custom_call.1} parent=1 // pred_check
      _
    $region27: #{tpu_custom_call.1} parent=1 // pred_check_branch
      %37 = sbr.rel (0) target = $region29
    $region28: #{tpu_custom_call.1} parent=1 // pred_region
      _
    $region29: #{tpu_custom_call.1} parent=1 // pred_fallthru
      _
    // Predicated region
    $region30: #{tpu_custom_call.1} parent=1 // pred_check
      _
    $region31: #{tpu_custom_call.1} parent=1 // pred_check_branch
      %39 = sbr.rel (0) target = $region33
    $region32: #{tpu_custom_call.1} parent=1 // pred_region
      _
    $region33: #{tpu_custom_call.1} parent=1 // pred_fallthru
      _
    // Predicated region
    $region34: #{tpu_custom_call.1} parent=1 // pred_check
      _
    $region35: #{tpu_custom_call.1} parent=1 // pred_check_branch
      %41 = sbr.rel (0) target = $region37
    $region36: #{tpu_custom_call.1} parent=1 // pred_region
      _
    $region37: #{tpu_custom_call.1} parent=1 // pred_fallthru
      _
    // Predicated region
    $region38: #{tpu_custom_call.1} parent=1 // pred_check
      _
    $region39: #{tpu_custom_call.1} parent=1 // pred_check_branch
      %43 = sbr.rel (0) target = $region41
    $region40: #{tpu_custom_call.1} parent=1 // pred_region
      _
    $region41: #{tpu_custom_call.1} parent=1 // pred_fallthru
      _
    // Predicated region
    $region42: #{tpu_custom_call.1} parent=1 // pred_check
      _
    $region43: #{tpu_custom_call.1} parent=1 // pred_check_branch
      %45 = sbr.rel (0) target = $region45
    $region44: #{tpu_custom_call.1} parent=1 // pred_region
      _
    $region45: #{tpu_custom_call.1} parent=1 // pred_fallthru
      _
    // Predicated region
    $region46: #{tpu_custom_call.1} parent=1 // pred_check
      _
    $region47: #{tpu_custom_call.1} parent=1 // pred_check_branch
      %47 = sbr.rel (0) target = $region49
    $region48: #{tpu_custom_call.1} parent=1 // pred_region
      _
    $region49: #{tpu_custom_call.1} parent=1 // pred_fallthru
      _
    // Predicated region
    $region50: #{tpu_custom_call.1} parent=1 // pred_check
      _
    $region51: #{tpu_custom_call.1} parent=1 // pred_check_branch
      %49 = sbr.rel (0) target = $region53
    $region52: #{tpu_custom_call.1} parent=1 // pred_region
      _
    $region53: #{tpu_custom_call.1} parent=1 // pred_fallthru
      _
    // Predicated region
    $region54: #{tpu_custom_call.1} parent=1 // pred_check
      _
    $region55: #{tpu_custom_call.1} parent=1 // pred_check_branch
      %51 = sbr.rel (0) target = $region57
    $region56: #{tpu_custom_call.1} parent=1 // pred_region
      _
    $region57: #{tpu_custom_call.1} parent=1 // pred_fallthru
      _
    // Predicated region
    $region58: #{tpu_custom_call.1} parent=1 // pred_check
      _
    $region59: #{tpu_custom_call.1} parent=1 // pred_check_branch
      %53 = sbr.rel (0) target = $region61
    $region60: #{tpu_custom_call.1} parent=1 // pred_region
      _
    $region61: #{tpu_custom_call.1} parent=1 // pred_fallthru
      _
    // Predicated region
    $region62: #{tpu_custom_call.1} parent=1 // pred_check
      _
    $region63: #{tpu_custom_call.1} parent=1 // pred_check_branch
      %55 = sbr.rel (0) target = $region65
    $region64: #{tpu_custom_call.1} parent=1 // pred_region
      _
    $region65: #{tpu_custom_call.1} parent=1 // pred_fallthru
      _
    // Predicated region
    $region66: #{tpu_custom_call.1} parent=1 // pred_check
      _
    $region67: #{tpu_custom_call.1} parent=1 // pred_check_branch
      %57 = sbr.rel (0) target = $region69
    $region68: #{tpu_custom_call.1} parent=1 // pred_region
      _
    $region69: #{tpu_custom_call.1} parent=1 // pred_fallthru
      _
    // Predicated region
    $region70: #{tpu_custom_call.1} parent=1 // pred_check
      _
    $region71: #{tpu_custom_call.1} parent=1 // pred_check_branch
      %59 = sbr.rel (0) target = $region73
    $region72: #{tpu_custom_call.1} parent=1 // pred_region
      _
    $region73: #{tpu_custom_call.1} parent=1 // pred_fallthru
      _
    %61 = vst [vmem:[#allocation2] sm:$0xf] 0
    %62 = vst [vmem:[#allocation2 + $0x10] sm:$0xf] 0
    %63 = vst [vmem:[#allocation3] sm:$0xf] 0
    %64 = vst [vmem:[#allocation3 + $0x10] sm:$0xf] 0
    %65 = vst [vmem:[#allocation2 + $0x8] sm:$0xf] 0
    %66 = vst [vmem:[#allocation2 + $0x18] sm:$0xf] 0
    %67 = vst [vmem:[#allocation3 + $0x8] sm:$0xf] 0
    %68 = vst [vmem:[#allocation3 + $0x18] sm:$0xf] 0
    %v69 = vld [vmem:[%s0] sm:$0xf]
    %70 = vst [vmem:[#allocation2 + $0x4] sm:$0xf] %v69
    %s71 = scalar_lea.vmem %s0, 4
    %v72 = vld [vmem:[%s71] sm:$0xf]
    %73 = vst [vmem:[#allocation2 + $0xc] sm:$0xf] %v72
    %v74 = vld [vmem:[%s1] sm:$0x7]
    %v75 = vld [vmem:[#allocation2 + $0x4] sm:$0xff]
    %v76 = vld [vmem:[#allocation2 + $0xc] sm:$0xf]
    %v77 = vld [vmem:[#allocation2] sm:$0xff]
    %v78 = vld [vmem:[#allocation2 + $0x8] sm:$0xff]
    %v81 = vunpack.c.l.b16 %v77
    %v82 = vunpack.c.h.b16 %v77
    %v83 = vunpack.c.l.b16 %v78
    %v84 = vunpack.c.h.b16 %v78
    %v85 = vpack.c.b16 %v81, %v81
    %v86 = vpack.c.b16 %v82, %v82
    %v87 = vpack.c.b16 %v83, %v83
    %v88 = vpack.c.b16 %v84, %v84
    %v91 = vunpack.c.l.b16 %v75
    %v92 = vunpack.c.h.b16 %v75
    %v93 = vunpack.c.l.b16 %v76
    %v94 = vpack.c.b16 %v91, %v91
    %v95 = vpack.c.b16 %v92, %v92
    %v96 = vpack.c.b16 %v93, %v93
    %97 = vrot.lane.b32.xlu0 %v94, 127
    %v98 = vpop.permute.xlu0 %97
    %99 = vrot.lane.b32.xlu0 %v95, 127
    %v100 = vpop.permute.xlu0 %99
    %101 = vrot.lane.b32.xlu0 %v96, 127
    %v102 = vpop.permute.xlu0 %101
    %vm103 = vcmask 1039360
    %v104 = vsel %vm103, %v98, %v100
    %v105 = vsel %vm103, %v100, %v102
    %vm106 = vcmask 1043456
    %v109 = vsel %vm106, %v85, %v98
    %v112 = vsel %vm106, %v86, %v104
    %v115 = vsel %vm106, %v87, %v105
    %v118 = vsel %vm106, %v88, %v102
    %v119 = vld [vmem:[%s2] sm:$0xf]
    %v120 = vld [vmem:[%s3] sm:$0xff]
    %122 = vset.pattern.permute.xlu0 0
    %123 = vperm.xlu0 %122, %v120
    %v124 = vpop.permute.xlu0 %123
    %130 = vrot.lane.b32.xlu0 %v109, 1
    %v131 = vpop.permute.xlu0 %130
    %132 = vrot.lane.b32.xlu0 %v112, 1
    %v133 = vpop.permute.xlu0 %132
    %134 = vrot.lane.b32.xlu0 %v115, 1
    %v135 = vpop.permute.xlu0 %134
    %136 = vrot.lane.b32.xlu0 %v118, 1
    %v137 = vpop.permute.xlu0 %136
    %vm138 = vcmask 7168
    %v139 = vsel %vm138, %v131, %v133
    %v140 = vsel %vm138, %v133, %v135
    %v141 = vsel %vm138, %v135, %v137
    %vm145 = vcmask 130048
    %v147 = vsel %vm145, %v119, 0
    %149 = vmatpush.bf16.msra.mxu0 0
    %150 = vmatpush.bf16.msra.mxu0 0
    %151 = vmatpush.bf16.msra.mxu0 0
    %152 = vmatpush.bf16.msra.mxu0 0
    %153 = vmatpush.bf16.msra.mxu0 0
    %154 = vmatpush.bf16.msra.mxu0 0
    %155 = vmatpush.bf16.msra.mxu0 0
    %156 = vmatpush.bf16.msra.mxu0 %v139
    %157 = vmatmul.bf16.gmra.mxu0 %v147
    %v158 = vpop.f32.mrf.mxu0
    %v159 = vadd.f32 %v124, %v158
    %v160 = vpop.f32.mrf.mxu0
    %161 = vdwg.mxu0
    %162 = vmatpush.bf16.msra.mxu0 0
    %163 = vmatpush.bf16.msra.mxu0 0
    %164 = vmatpush.bf16.msra.mxu0 0
    %165 = vmatpush.bf16.msra.mxu0 0
    %166 = vmatpush.bf16.msra.mxu0 0
    %167 = vmatpush.bf16.msra.mxu0 0
    %168 = vmatpush.bf16.msra.mxu0 0
    %169 = vmatpush.bf16.msra.mxu0 %v140
    %170 = vmatmul.bf16.gmra.mxu0 %v147
    %v171 = vpop.f32.mrf.mxu0
    %v172 = vadd.f32 %v124, %v171
    %v173 = vpop.f32.mrf.mxu0
    %174 = vdwg.mxu0
    %175 = vmatpush.bf16.msra.mxu0 0
    %176 = vmatpush.bf16.msra.mxu0 0
    %177 = vmatpush.bf16.msra.mxu0 0
    %178 = vmatpush.bf16.msra.mxu0 0
    %179 = vmatpush.bf16.msra.mxu0 0
    %180 = vmatpush.bf16.msra.mxu0 0
    %181 = vmatpush.bf16.msra.mxu0 0
    %182 = vmatpush.bf16.msra.mxu0 %v141
    %183 = vmatmul.bf16.gmra.mxu0 %v147
    %v184 = vpop.f32.mrf.mxu0
    %v185 = vadd.f32 %v124, %v184
    %v186 = vpop.f32.mrf.mxu0
    %187 = vdwg.mxu0
    %v188 = vmax.f32 %v159, 0.0
    %v189 = vmax.f32 %v172, 0.0
    %v190 = vmax.f32 %v185, 0.0
    %v192 = vperm.slane %v74, 0
    %v193 = vperm.slane %v74, 1
    %v194 = vperm.slane %v74, 2
    %v198 = vmul.f32 %v188, %v192
    %v199 = vmul.f32 %v189, %v193
    %v200 = vmul.f32 %v190, %v194
    %v201 = vpack.c.bf16 %v199, %v198
    %v202 = vpack.c.bf16 %v200, %v200
    %203 = vst [vmem:[#allocation3 + $0x4] sm:$0xff] %v201
    %204 = vst [vmem:[#allocation3 + $0xc] sm:$0xf] %v202
    %v205 = vld [vmem:[#allocation3] sm:$0xff]
    %v206 = vld [vmem:[#allocation3 + $0x8] sm:$0xff]
    %v209 = vunpack.c.l.b16 %v205
    %v210 = vunpack.c.h.b16 %v205
    %v211 = vunpack.c.l.b16 %v206
    %v212 = vunpack.c.h.b16 %v206
    %v213 = vpack.c.b16 %v209, %v209
    %v214 = vpack.c.b16 %v210, %v210
    %v215 = vpack.c.b16 %v211, %v211
    %v216 = vpack.c.b16 %v212, %v212
    %v219 = vunpack.c.l.b16 %v201
    %v220 = vunpack.c.h.b16 %v201
    %v221 = vunpack.c.l.b16 %v202
    %v222 = vpack.c.b16 %v219, %v219
    %v223 = vpack.c.b16 %v220, %v220
    %v224 = vpack.c.b16 %v221, %v221
    %225 = vrot.lane.b32.xlu0 %v222, 127
    %v226 = vpop.permute.xlu0 %225
    %227 = vrot.lane.b32.xlu0 %v223, 127
    %v228 = vpop.permute.xlu0 %227
    %229 = vrot.lane.b32.xlu0 %v224, 127
    %v230 = vpop.permute.xlu0 %229
    %v231 = vsel %vm103, %v226, %v228
    %v232 = vsel %vm103, %v228, %v230
    %v235 = vsel %vm106, %v213, %v226
    %v238 = vsel %vm106, %v214, %v231
    %v241 = vsel %vm106, %v215, %v232
    %v244 = vsel %vm106, %v216, %v230
    %v245 = vld [vmem:[%s4] sm:$0xf]
    %v246 = vld [vmem:[%s5] sm:$0xff]
    %248 = vset.pattern.permute.xlu0 0
    %249 = vperm.xlu0 %248, %v246
    %v250 = vpop.permute.xlu0 %249
    %256 = vrot.lane.b32.xlu0 %v235, 1
    %v257 = vpop.permute.xlu0 %256
    %258 = vrot.lane.b32.xlu0 %v238, 1
    %v259 = vpop.permute.xlu0 %258
    %260 = vrot.lane.b32.xlu0 %v241, 1
    %v261 = vpop.permute.xlu0 %260
    %262 = vrot.lane.b32.xlu0 %v244, 1
    %v263 = vpop.permute.xlu0 %262
    %v264 = vsel %vm138, %v257, %v259
    %v265 = vsel %vm138, %v259, %v261
    %v266 = vsel %vm138, %v261, %v263
    %v271 = vsel %vm145, %v245, 0
    %273 = vmatpush.bf16.msra.mxu0 0
    %274 = vmatpush.bf16.msra.mxu0 0
    %275 = vmatpush.bf16.msra.mxu0 0
    %276 = vmatpush.bf16.msra.mxu0 0
    %277 = vmatpush.bf16.msra.mxu0 0
    %278 = vmatpush.bf16.msra.mxu0 0
    %279 = vmatpush.bf16.msra.mxu0 0
    %280 = vmatpush.bf16.msra.mxu0 %v264
    %281 = vmatmul.bf16.gmra.mxu0 %v271
    %v282 = vpop.f32.mrf.mxu0
    %v283 = vadd.f32 %v250, %v282
    %v284 = vpop.f32.mrf.mxu0
    %285 = vdwg.mxu0
    %286 = vmatpush.bf16.msra.mxu0 0
    %287 = vmatpush.bf16.msra.mxu0 0
    %288 = vmatpush.bf16.msra.mxu0 0
    %289 = vmatpush.bf16.msra.mxu0 0
    %290 = vmatpush.bf16.msra.mxu0 0
    %291 = vmatpush.bf16.msra.mxu0 0
    %292 = vmatpush.bf16.msra.mxu0 0
    %293 = vmatpush.bf16.msra.mxu0 %v265
    %294 = vmatmul.bf16.gmra.mxu0 %v271
    %v295 = vpop.f32.mrf.mxu0
    %v296 = vadd.f32 %v250, %v295
    %v297 = vpop.f32.mrf.mxu0
    %298 = vdwg.mxu0
    %299 = vmatpush.bf16.msra.mxu0 0
    %300 = vmatpush.bf16.msra.mxu0 0
    %301 = vmatpush.bf16.msra.mxu0 0
    %302 = vmatpush.bf16.msra.mxu0 0
    %303 = vmatpush.bf16.msra.mxu0 0
    %304 = vmatpush.bf16.msra.mxu0 0
    %305 = vmatpush.bf16.msra.mxu0 0
    %306 = vmatpush.bf16.msra.mxu0 %v266
    %307 = vmatmul.bf16.gmra.mxu0 %v271
    %v308 = vpop.f32.mrf.mxu0
    %v309 = vadd.f32 %v250, %v308
    %v310 = vpop.f32.mrf.mxu0
    %311 = vdwg.mxu0
    %v312 = vmax.f32 %v283, 0.0
    %v313 = vmax.f32 %v296, 0.0
    %v314 = vmax.f32 %v309, 0.0
    %v315 = vld [vmem:[%s6] sm:$0xf]
    %v316 = vld [vmem:[%s7] sm:$0xff]
    %318 = vset.pattern.permute.xlu0 0
    %319 = vperm.xlu0 %318, %v316
    %v320 = vpop.permute.xlu0 %319
    %vm322 = vcmask 64512
    %v324 = vsel %vm322, %v315, 0
    %v327 = vsel %vm106, %v94, 0
    %v330 = vsel %vm106, %v95, 0
    %v333 = vsel %vm106, %v96, 0
    %335 = vmatpush.bf16.msra.mxu0 0
    %336 = vmatpush.bf16.msra.mxu0 0
    %337 = vmatpush.bf16.msra.mxu0 0
    %338 = vmatpush.bf16.msra.mxu0 0
    %339 = vmatpush.bf16.msra.mxu0 0
    %340 = vmatpush.bf16.msra.mxu0 0
    %341 = vmatpush.bf16.msra.mxu0 0
    %342 = vmatpush.bf16.msra.mxu0 %v327
    %343 = vmatmul.bf16.gmra.mxu0 %v324
    %v344 = vpop.f32.mrf.mxu0
    %v345 = vadd.f32 %v320, %v344
    %v346 = vpop.f32.mrf.mxu0
    %347 = vdwg.mxu0
    %348 = vmatpush.bf16.msra.mxu0 0
    %349 = vmatpush.bf16.msra.mxu0 0
    %350 = vmatpush.bf16.msra.mxu0 0
    %351 = vmatpush.bf16.msra.mxu0 0
    %352 = vmatpush.bf16.msra.mxu0 0
    %353 = vmatpush.bf16.msra.mxu0 0
    %354 = vmatpush.bf16.msra.mxu0 0
    %355 = vmatpush.bf16.msra.mxu0 %v330
    %356 = vmatmul.bf16.gmra.mxu0 %v324
    %v357 = vpop.f32.mrf.mxu0
    %v358 = vadd.f32 %v320, %v357
    %v359 = vpop.f32.mrf.mxu0
    %360 = vdwg.mxu0
    %361 = vmatpush.bf16.msra.mxu0 0
    %362 = vmatpush.bf16.msra.mxu0 0
    %363 = vmatpush.bf16.msra.mxu0 0
    %364 = vmatpush.bf16.msra.mxu0 0
    %365 = vmatpush.bf16.msra.mxu0 0
    %366 = vmatpush.bf16.msra.mxu0 0
    %367 = vmatpush.bf16.msra.mxu0 0
    %368 = vmatpush.bf16.msra.mxu0 %v333
    %369 = vmatmul.bf16.gmra.mxu0 %v324
    %v370 = vpop.f32.mrf.mxu0
    %v371 = vadd.f32 %v320, %v370
    %v372 = vpop.f32.mrf.mxu0
    %373 = vdwg.mxu0
    %v374 = vadd.f32 %v312, %v345
    %v375 = vadd.f32 %v313, %v358
    %v376 = vadd.f32 %v314, %v371
    %v377 = vmax.f32 %v374, 0.0
    %v378 = vmax.f32 %v375, 0.0
    %v379 = vmax.f32 %v376, 0.0
    %v380 = vmul.f32 %v377, %v192
    %v381 = vmul.f32 %v378, %v193
    %v382 = vmul.f32 %v379, %v194
    %v383 = vpack.c.bf16 %v381, %v380
    %v384 = vpack.c.bf16 %v382, %v382
    %385 = vst [vmem:[#allocation2 + $0x4] sm:$0xff] %v383
    %386 = vst [vmem:[#allocation2 + $0xc] sm:$0xf] %v384
    %v387 = vld [vmem:[#allocation2] sm:$0xff]
    %v388 = vld [vmem:[#allocation2 + $0x8] sm:$0xff]
    %v391 = vunpack.c.l.b16 %v387
    %v392 = vunpack.c.h.b16 %v387
    %v393 = vunpack.c.l.b16 %v388
    %v394 = vunpack.c.h.b16 %v388
    %v395 = vpack.c.b16 %v391, %v391
    %v396 = vpack.c.b16 %v392, %v392
    %v397 = vpack.c.b16 %v393, %v393
    %v398 = vpack.c.b16 %v394, %v394
    %v401 = vunpack.c.l.b16 %v383
    %v402 = vunpack.c.h.b16 %v383
    %v403 = vunpack.c.l.b16 %v384
    %v404 = vpack.c.b16 %v401, %v401
    %v405 = vpack.c.b16 %v402, %v402
    %v406 = vpack.c.b16 %v403, %v403
    %407 = vrot.lane.b32.xlu0 %v404, 126
    %v408 = vpop.permute.xlu0 %407
    %409 = vrot.lane.b32.xlu0 %v405, 126
    %v410 = vpop.permute.xlu0 %409
    %411 = vrot.lane.b32.xlu0 %v406, 126
    %v412 = vpop.permute.xlu0 %411
    %vm413 = vcmask 1031168
    %v414 = vsel %vm413, %v408, %v410
    %v415 = vsel %vm413, %v410, %v412
    %v418 = vsel %vm106, %v395, %v408
    %v421 = vsel %vm106, %v396, %v414
    %v424 = vsel %vm106, %v397, %v415
    %v427 = vsel %vm106, %v398, %v412
    %v428 = vld [vmem:[%s8] sm:$0xf]
    %v429 = vld [vmem:[%s9] sm:$0xff]
    %431 = vset.pattern.permute.xlu0 0
    %432 = vperm.xlu0 %431, %v429
    %v433 = vpop.permute.xlu0 %432
    %439 = vrot.lane.b32.xlu0 %v418, 2
    %v440 = vpop.permute.xlu0 %439
    %441 = vrot.lane.b32.xlu0 %v421, 2
    %v442 = vpop.permute.xlu0 %441
    %443 = vrot.lane.b32.xlu0 %v424, 2
    %v444 = vpop.permute.xlu0 %443
    %445 = vrot.lane.b32.xlu0 %v427, 2
    %v446 = vpop.permute.xlu0 %445
    %vm447 = vcmask 15360
    %v448 = vsel %vm447, %v440, %v442
    %v449 = vsel %vm447, %v442, %v444
    %v450 = vsel %vm447, %v444, %v446
    %v455 = vsel %vm145, %v428, 0
    %457 = vmatpush.bf16.msra.mxu0 0
    %458 = vmatpush.bf16.msra.mxu0 0
    %459 = vmatpush.bf16.msra.mxu0 0
    %460 = vmatpush.bf16.msra.mxu0 0
    %461 = vmatpush.bf16.msra.mxu0 0
    %462 = vmatpush.bf16.msra.mxu0 0
    %463 = vmatpush.bf16.msra.mxu0 0
    %464 = vmatpush.bf16.msra.mxu0 %v448
    %465 = vmatmul.bf16.gmra.mxu0 %v455
    %v466 = vpop.f32.mrf.mxu0
    %v467 = vadd.f32 %v433, %v466
    %v468 = vpop.f32.mrf.mxu0
    %469 = vdwg.mxu0
    %470 = vmatpush.bf16.msra.mxu0 0
    %471 = vmatpush.bf16.msra.mxu0 0
    %472 = vmatpush.bf16.msra.mxu0 0
    %473 = vmatpush.bf16.msra.mxu0 0
    %474 = vmatpush.bf16.msra.mxu0 0
    %475 = vmatpush.bf16.msra.mxu0 0
    %476 = vmatpush.bf16.msra.mxu0 0
    %477 = vmatpush.bf16.msra.mxu0 %v449
    %478 = vmatmul.bf16.gmra.mxu0 %v455
    %v479 = vpop.f32.mrf.mxu0
    %v480 = vadd.f32 %v433, %v479
    %v481 = vpop.f32.mrf.mxu0
    %482 = vdwg.mxu0
    %483 = vmatpush.bf16.msra.mxu0 0
    %484 = vmatpush.bf16.msra.mxu0 0
    %485 = vmatpush.bf16.msra.mxu0 0
    %486 = vmatpush.bf16.msra.mxu0 0
    %487 = vmatpush.bf16.msra.mxu0 0
    %488 = vmatpush.bf16.msra.mxu0 0
    %489 = vmatpush.bf16.msra.mxu0 0
    %490 = vmatpush.bf16.msra.mxu0 %v450
    %491 = vmatmul.bf16.gmra.mxu0 %v455
    %v492 = vpop.f32.mrf.mxu0
    %v493 = vadd.f32 %v433, %v492
    %v494 = vpop.f32.mrf.mxu0
    %495 = vdwg.mxu0
    %v496 = vmax.f32 %v467, 0.0
    %v497 = vmax.f32 %v480, 0.0
    %v498 = vmax.f32 %v493, 0.0
    %v499 = vmul.f32 %v496, %v192
    %v500 = vmul.f32 %v497, %v193
    %v501 = vmul.f32 %v498, %v194
    %v502 = vpack.c.bf16 %v500, %v499
    %v503 = vpack.c.bf16 %v501, %v501
    %504 = vst [vmem:[#allocation3 + $0x4] sm:$0xff] %v502
    %505 = vst [vmem:[#allocation3 + $0xc] sm:$0xf] %v503
    %v506 = vld [vmem:[#allocation3] sm:$0xff]
    %v507 = vld [vmem:[#allocation3 + $0x8] sm:$0xff]
    %v510 = vunpack.c.l.b16 %v506
    %v511 = vunpack.c.h.b16 %v506
    %v512 = vunpack.c.l.b16 %v507
    %v513 = vunpack.c.h.b16 %v507
    %v514 = vpack.c.b16 %v510, %v510
    %v515 = vpack.c.b16 %v511, %v511
    %v516 = vpack.c.b16 %v512, %v512
    %v517 = vpack.c.b16 %v513, %v513
    %v520 = vunpack.c.l.b16 %v502
    %v521 = vunpack.c.h.b16 %v502
    %v522 = vunpack.c.l.b16 %v503
    %v523 = vpack.c.b16 %v520, %v520
    %v524 = vpack.c.b16 %v521, %v521
    %v525 = vpack.c.b16 %v522, %v522
    %526 = vrot.lane.b32.xlu0 %v523, 126
    %v527 = vpop.permute.xlu0 %526
    %528 = vrot.lane.b32.xlu0 %v524, 126
    %v529 = vpop.permute.xlu0 %528
    %530 = vrot.lane.b32.xlu0 %v525, 126
    %v531 = vpop.permute.xlu0 %530
    %v532 = vsel %vm413, %v527, %v529
    %v533 = vsel %vm413, %v529, %v531
    %v536 = vsel %vm106, %v514, %v527
    %v539 = vsel %vm106, %v515, %v532
    %v542 = vsel %vm106, %v516, %v533
    %v545 = vsel %vm106, %v517, %v531
    %v546 = vld [vmem:[%s10] sm:$0xf]
    %v547 = vld [vmem:[%s11] sm:$0xff]
    %549 = vset.pattern.permute.xlu0 0
    %550 = vperm.xlu0 %549, %v547
    %v551 = vpop.permute.xlu0 %550
    %557 = vrot.lane.b32.xlu0 %v536, 2
    %v558 = vpop.permute.xlu0 %557
    %559 = vrot.lane.b32.xlu0 %v539, 2
    %v560 = vpop.permute.xlu0 %559
    %561 = vrot.lane.b32.xlu0 %v542, 2
    %v562 = vpop.permute.xlu0 %561
    %563 = vrot.lane.b32.xlu0 %v545, 2
    %v564 = vpop.permute.xlu0 %563
    %v565 = vsel %vm447, %v558, %v560
    %v566 = vsel %vm447, %v560, %v562
    %v567 = vsel %vm447, %v562, %v564
    %v572 = vsel %vm145, %v546, 0
    %574 = vmatpush.bf16.msra.mxu0 0
    %575 = vmatpush.bf16.msra.mxu0 0
    %576 = vmatpush.bf16.msra.mxu0 0
    %577 = vmatpush.bf16.msra.mxu0 0
    %578 = vmatpush.bf16.msra.mxu0 0
    %579 = vmatpush.bf16.msra.mxu0 0
    %580 = vmatpush.bf16.msra.mxu0 0
    %581 = vmatpush.bf16.msra.mxu0 %v565
    %582 = vmatmul.bf16.gmra.mxu0 %v572
    %v583 = vpop.f32.mrf.mxu0
    %v584 = vadd.f32 %v551, %v583
    %v585 = vpop.f32.mrf.mxu0
    %586 = vdwg.mxu0
    %587 = vmatpush.bf16.msra.mxu0 0
    %588 = vmatpush.bf16.msra.mxu0 0
    %589 = vmatpush.bf16.msra.mxu0 0
    %590 = vmatpush.bf16.msra.mxu0 0
    %591 = vmatpush.bf16.msra.mxu0 0
    %592 = vmatpush.bf16.msra.mxu0 0
    %593 = vmatpush.bf16.msra.mxu0 0
    %594 = vmatpush.bf16.msra.mxu0 %v566
    %595 = vmatmul.bf16.gmra.mxu0 %v572
    %v596 = vpop.f32.mrf.mxu0
    %v597 = vadd.f32 %v551, %v596
    %v598 = vpop.f32.mrf.mxu0
    %599 = vdwg.mxu0
    %600 = vmatpush.bf16.msra.mxu0 0
    %601 = vmatpush.bf16.msra.mxu0 0
    %602 = vmatpush.bf16.msra.mxu0 0
    %603 = vmatpush.bf16.msra.mxu0 0
    %604 = vmatpush.bf16.msra.mxu0 0
    %605 = vmatpush.bf16.msra.mxu0 0
    %606 = vmatpush.bf16.msra.mxu0 0
    %607 = vmatpush.bf16.msra.mxu0 %v567
    %608 = vmatmul.bf16.gmra.mxu0 %v572
    %v609 = vpop.f32.mrf.mxu0
    %v610 = vadd.f32 %v551, %v609
    %v611 = vpop.f32.mrf.mxu0
    %612 = vdwg.mxu0
    %v613 = vmax.f32 %v584, 0.0
    %v614 = vmax.f32 %v597, 0.0
    %v615 = vmax.f32 %v610, 0.0
    %v616 = vunpack.c.l.bf16 %v383
    %v617 = vunpack.c.h.bf16 %v383
    %v618 = vunpack.c.l.bf16 %v384
    %v619 = vadd.f32 %v613, %v616
    %v620 = vadd.f32 %v614, %v617
    %v621 = vadd.f32 %v615, %v618
    %v622 = vmax.f32 %v619, 0.0
    %v623 = vmax.f32 %v620, 0.0
    %v624 = vmax.f32 %v621, 0.0
    %v625 = vmul.f32 %v622, %v192
    %v626 = vmul.f32 %v623, %v193
    %v627 = vmul.f32 %v624, %v194
    %v628 = vpack.c.bf16 %v626, %v625
    %v629 = vpack.c.bf16 %v627, %v627
    %630 = vst [vmem:[#allocation2 + $0x4] sm:$0xff] %v628
    %631 = vst [vmem:[#allocation2 + $0xc] sm:$0xf] %v629
    %v632 = vld [vmem:[#allocation2] sm:$0xff]
    %v633 = vld [vmem:[#allocation2 + $0x8] sm:$0xff]
    %v636 = vunpack.c.l.b16 %v632
    %v637 = vunpack.c.h.b16 %v632
    %v638 = vunpack.c.l.b16 %v633
    %v639 = vunpack.c.h.b16 %v633
    %v640 = vpack.c.b16 %v636, %v636
    %v641 = vpack.c.b16 %v637, %v637
    %v642 = vpack.c.b16 %v638, %v638
    %v643 = vpack.c.b16 %v639, %v639
    %v646 = vunpack.c.l.b16 %v628
    %v647 = vunpack.c.h.b16 %v628
    %v648 = vunpack.c.l.b16 %v629
    %v649 = vpack.c.b16 %v646, %v646
    %v650 = vpack.c.b16 %v647, %v647
    %v651 = vpack.c.b16 %v648, %v648
    %652 = vrot.lane.b32.xlu0 %v649, 124
    %v653 = vpop.permute.xlu0 %652
    %654 = vrot.lane.b32.xlu0 %v650, 124
    %v655 = vpop.permute.xlu0 %654
    %656 = vrot.lane.b32.xlu0 %v651, 124
    %v657 = vpop.permute.xlu0 %656
    %vm658 = vcmask 1014784
    %v659 = vsel %vm658, %v653, %v655
    %v660 = vsel %vm658, %v655, %v657
    %v663 = vsel %vm106, %v640, %v653
    %v666 = vsel %vm106, %v641, %v659
    %v669 = vsel %vm106, %v642, %v660
    %v672 = vsel %vm106, %v643, %v657
    %v673 = vld [vmem:[%s12] sm:$0xf]
    %v674 = vld [vmem:[%s12 + $0x4] sm:$0xf]
    %v675 = vld [vmem:[%s13] sm:$0xff]
    %v676 = vld [vmem:[%s13 + $0x8] sm:$0xff]
    %678 = vset.pattern.permute.xlu0 0
    %679 = vperm.xlu0 %678, %v675
    %v680 = vpop.permute.xlu0 %679
    %683 = vset.pattern.permute.xlu0 0
    %684 = vperm.xlu0 %683, %v676
    %v685 = vpop.permute.xlu0 %684
    %v689 = vunpack.c.l.b16 %v673
    %v690 = vunpack.c.l.b16 %v674
    %v691 = vpack.c.b16 %v690, %v689
    %696 = vrot.lane.b32.xlu0 %v663, 4
    %v697 = vpop.permute.xlu0 %696
    %698 = vrot.lane.b32.xlu0 %v666, 4
    %v699 = vpop.permute.xlu0 %698
    %700 = vrot.lane.b32.xlu0 %v669, 4
    %v701 = vpop.permute.xlu0 %700
    %702 = vrot.lane.b32.xlu0 %v672, 4
    %v703 = vpop.permute.xlu0 %702
    %vm704 = vcmask 31744
    %v705 = vsel %vm704, %v697, %v699
    %v706 = vsel %vm704, %v699, %v701
    %v707 = vsel %vm704, %v701, %v703
    %v712 = vsel %vm145, %v691, 0
    %714 = vmatpush.bf16.msra.mxu0 0
    %715 = vmatpush.bf16.msra.mxu0 0
    %716 = vmatpush.bf16.msra.mxu0 0
    %717 = vmatpush.bf16.msra.mxu0 0
    %718 = vmatpush.bf16.msra.mxu0 0
    %719 = vmatpush.bf16.msra.mxu0 0
    %720 = vmatpush.bf16.msra.mxu0 0
    %721 = vmatpush.bf16.msra.mxu0 %v705
    %722 = vmatmul.bf16.gmra.mxu0 %v712
    %v723 = vpop.f32.mrf.mxu0
    %v724 = vadd.f32 %v680, %v723
    %v725 = vpop.f32.mrf.mxu0
    %v726 = vadd.f32 %v685, %v725
    %727 = vdwg.mxu0
    %728 = vmatpush.bf16.msra.mxu0 0
    %729 = vmatpush.bf16.msra.mxu0 0
    %730 = vmatpush.bf16.msra.mxu0 0
    %731 = vmatpush.bf16.msra.mxu0 0
    %732 = vmatpush.bf16.msra.mxu0 0
    %733 = vmatpush.bf16.msra.mxu0 0
    %734 = vmatpush.bf16.msra.mxu0 0
    %735 = vmatpush.bf16.msra.mxu0 %v706
    %736 = vmatmul.bf16.gmra.mxu0 %v712
    %v737 = vpop.f32.mrf.mxu0
    %v738 = vadd.f32 %v680, %v737
    %v739 = vpop.f32.mrf.mxu0
    %v740 = vadd.f32 %v685, %v739
    %741 = vdwg.mxu0
    %742 = vmatpush.bf16.msra.mxu0 0
    %743 = vmatpush.bf16.msra.mxu0 0
    %744 = vmatpush.bf16.msra.mxu0 0
    %745 = vmatpush.bf16.msra.mxu0 0
    %746 = vmatpush.bf16.msra.mxu0 0
    %747 = vmatpush.bf16.msra.mxu0 0
    %748 = vmatpush.bf16.msra.mxu0 0
    %749 = vmatpush.bf16.msra.mxu0 %v707
    %750 = vmatmul.bf16.gmra.mxu0 %v712
    %v751 = vpop.f32.mrf.mxu0
    %v752 = vadd.f32 %v680, %v751
    %v753 = vpop.f32.mrf.mxu0
    %v754 = vadd.f32 %v685, %v753
    %755 = vdwg.mxu0
    %v756 = vmax.f32 %v724, 0.0
    %v757 = vmax.f32 %v738, 0.0
    %v758 = vmax.f32 %v752, 0.0
    %v759 = vmax.f32 %v726, 0.0
    %v760 = vmax.f32 %v740, 0.0
    %v761 = vmax.f32 %v754, 0.0
    %v762 = vmul.f32 %v756, %v192
    %v763 = vmul.f32 %v757, %v193
    %v764 = vmul.f32 %v758, %v194
    %v765 = vmul.f32 %v759, %v192
    %v766 = vmul.f32 %v760, %v193
    %v767 = vmul.f32 %v761, %v194
    %v768 = vpack.c.bf16 %v763, %v762
    %v769 = vpack.c.bf16 %v764, %v764
    %v770 = vpack.c.bf16 %v766, %v765
    %v771 = vpack.c.bf16 %v767, %v767
    %772 = vst [vmem:[#allocation3 + $0x4] sm:$0xff] %v768
    %773 = vst [vmem:[#allocation3 + $0xc] sm:$0xf] %v769
    %774 = vst [vmem:[#allocation3 + $0x14] sm:$0xff] %v770
    %775 = vst [vmem:[#allocation3 + $0x1c] sm:$0xf] %v771
    %v776 = vld [vmem:[#allocation3] sm:$0xff]
    %v777 = vld [vmem:[#allocation3 + $0x8] sm:$0xff]
    %v778 = vld [vmem:[#allocation3 + $0x10] sm:$0xff]
    %v779 = vld [vmem:[#allocation3 + $0x18] sm:$0xff]
    %v784 = vunpack.c.l.b16 %v776
    %v785 = vunpack.c.h.b16 %v776
    %v786 = vunpack.c.l.b16 %v777
    %v787 = vunpack.c.h.b16 %v777
    %v788 = vunpack.c.l.b16 %v778
    %v789 = vunpack.c.h.b16 %v778
    %v790 = vunpack.c.l.b16 %v779
    %v791 = vunpack.c.h.b16 %v779
    %v792 = vpack.c.b16 %v788, %v784
    %v793 = vpack.c.b16 %v789, %v785
    %v794 = vpack.c.b16 %v790, %v786
    %v795 = vpack.c.b16 %v791, %v787
    %v800 = vunpack.c.l.b16 %v768
    %v801 = vunpack.c.h.b16 %v768
    %v802 = vunpack.c.l.b16 %v769
    %v803 = vunpack.c.l.b16 %v770
    %v804 = vunpack.c.h.b16 %v770
    %v805 = vunpack.c.l.b16 %v771
    %v806 = vpack.c.b16 %v803, %v800
    %v807 = vpack.c.b16 %v804, %v801
    %v808 = vpack.c.b16 %v805, %v802
    %809 = vrot.lane.b32.xlu0 %v806, 124
    %v810 = vpop.permute.xlu0 %809
    %811 = vrot.lane.b32.xlu0 %v807, 124
    %v812 = vpop.permute.xlu0 %811
    %813 = vrot.lane.b32.xlu0 %v808, 124
    %v814 = vpop.permute.xlu0 %813
    %v815 = vsel %vm658, %v810, %v812
    %v816 = vsel %vm658, %v812, %v814
    %v817 = vld [vmem:[%s14] sm:$0xf]
    %v818 = vld [vmem:[%s14 + $0x4] sm:$0xf]
    %v819 = vld [vmem:[%s15] sm:$0xff]
    %v820 = vld [vmem:[%s15 + $0x8] sm:$0xff]
    %822 = vset.pattern.permute.xlu0 0
    %823 = vperm.xlu0 %822, %v819
    %v824 = vpop.permute.xlu0 %823
    %827 = vset.pattern.permute.xlu0 0
    %828 = vperm.xlu0 %827, %v820
    %v829 = vpop.permute.xlu0 %828
    %v833 = vunpack.c.l.b16 %v817
    %v834 = vunpack.c.l.b16 %v818
    %v835 = vpack.c.b16 %v834, %v833
    %836 = vrot.lane.b32.xlu0 %v792, 4
    %v837 = vpop.permute.xlu0 %836
    %838 = vrot.lane.b32.xlu0 %v793, 4
    %v839 = vpop.permute.xlu0 %838
    %840 = vrot.lane.b32.xlu0 %v794, 4
    %v841 = vpop.permute.xlu0 %840
    %842 = vrot.lane.b32.xlu0 %v795, 4
    %v843 = vpop.permute.xlu0 %842
    %844 = vrot.lane.b32.xlu0 %v810, 4
    %v845 = vpop.permute.xlu0 %844
    %846 = vrot.lane.b32.xlu0 %v815, 4
    %v847 = vpop.permute.xlu0 %846
    %848 = vrot.lane.b32.xlu0 %v816, 4
    %v849 = vpop.permute.xlu0 %848
    %850 = vrot.lane.b32.xlu0 %v814, 4
    %v851 = vpop.permute.xlu0 %850
    %v852 = vsel %vm704, %v837, %v839
    %v853 = vsel %vm704, %v839, %v841
    %v854 = vsel %vm704, %v841, %v843
    %v855 = vsel %vm704, %v845, %v847
    %v856 = vsel %vm704, %v847, %v849
    %v857 = vsel %vm704, %v849, %v851
    %vm864 = vcmask 261120
    %v866 = vsel %vm864, %v835, 0
    %868 = vmatpush.bf16.msra.mxu0 0
    %869 = vmatpush.bf16.msra.mxu0 0
    %870 = vmatpush.bf16.msra.mxu0 0
    %871 = vmatpush.bf16.msra.mxu0 0
    %872 = vmatpush.bf16.msra.mxu0 0
    %873 = vmatpush.bf16.msra.mxu0 0
    %874 = vmatpush.bf16.msra.mxu0 %v855
    %875 = vmatpush.bf16.msra.mxu0 %v852
    %876 = vmatmul.bf16.gmra.mxu0 %v866
    %v877 = vpop.f32.mrf.mxu0
    %v878 = vadd.f32 %v824, %v877
    %v879 = vpop.f32.mrf.mxu0
    %v880 = vadd.f32 %v829, %v879
    %881 = vdwg.mxu0
    %882 = vmatpush.bf16.msra.mxu0 0
    %883 = vmatpush.bf16.msra.mxu0 0
    %884 = vmatpush.bf16.msra.mxu0 0
    %885 = vmatpush.bf16.msra.mxu0 0
    %886 = vmatpush.bf16.msra.mxu0 0
    %887 = vmatpush.bf16.msra.mxu0 0
    %888 = vmatpush.bf16.msra.mxu0 %v856
    %889 = vmatpush.bf16.msra.mxu0 %v853
    %890 = vmatmul.bf16.gmra.mxu0 %v866
    %v891 = vpop.f32.mrf.mxu0
    %v892 = vadd.f32 %v824, %v891
    %v893 = vpop.f32.mrf.mxu0
    %v894 = vadd.f32 %v829, %v893
    %895 = vdwg.mxu0
    %896 = vmatpush.bf16.msra.mxu0 0
    %897 = vmatpush.bf16.msra.mxu0 0
    %898 = vmatpush.bf16.msra.mxu0 0
    %899 = vmatpush.bf16.msra.mxu0 0
    %900 = vmatpush.bf16.msra.mxu0 0
    %901 = vmatpush.bf16.msra.mxu0 0
    %902 = vmatpush.bf16.msra.mxu0 %v857
    %903 = vmatpush.bf16.msra.mxu0 %v854
    %904 = vmatmul.bf16.gmra.mxu0 %v866
    %v905 = vpop.f32.mrf.mxu0
    %v906 = vadd.f32 %v824, %v905
    %v907 = vpop.f32.mrf.mxu0
    %v908 = vadd.f32 %v829, %v907
    %909 = vdwg.mxu0
    %v910 = vmax.f32 %v878, 0.0
    %v911 = vmax.f32 %v892, 0.0
    %v912 = vmax.f32 %v906, 0.0
    %v913 = vmax.f32 %v880, 0.0
    %v914 = vmax.f32 %v894, 0.0
    %v915 = vmax.f32 %v908, 0.0
    %v916 = vld [vmem:[%s16] sm:$0xf]
    %v917 = vld [vmem:[%s16 + $0x4] sm:$0xf]
    %v918 = vld [vmem:[%s17] sm:$0xff]
    %v919 = vld [vmem:[%s17 + $0x8] sm:$0xff]
    %921 = vset.pattern.permute.xlu0 0
    %922 = vperm.xlu0 %921, %v918
    %v923 = vpop.permute.xlu0 %922
    %926 = vset.pattern.permute.xlu0 0
    %927 = vperm.xlu0 %926, %v919
    %v928 = vpop.permute.xlu0 %927
    %v932 = vunpack.c.l.b16 %v916
    %v933 = vunpack.c.l.b16 %v917
    %v934 = vpack.c.b16 %v933, %v932
    %v936 = vsel %vm322, %v934, 0
    %v939 = vsel %vm106, %v649, 0
    %v942 = vsel %vm106, %v650, 0
    %v945 = vsel %vm106, %v651, 0
    %947 = vmatpush.bf16.msra.mxu0 0
    %948 = vmatpush.bf16.msra.mxu0 0
    %949 = vmatpush.bf16.msra.mxu0 0
    %950 = vmatpush.bf16.msra.mxu0 0
    %951 = vmatpush.bf16.msra.mxu0 0
    %952 = vmatpush.bf16.msra.mxu0 0
    %953 = vmatpush.bf16.msra.mxu0 0
    %954 = vmatpush.bf16.msra.mxu0 %v939
    %955 = vmatmul.bf16.gmra.mxu0 %v936
    %v956 = vpop.f32.mrf.mxu0
    %v957 = vadd.f32 %v923, %v956
    %v958 = vpop.f32.mrf.mxu0
    %v959 = vadd.f32 %v928, %v958
    %960 = vdwg.mxu0
    %961 = vmatpush.bf16.msra.mxu0 0
    %962 = vmatpush.bf16.msra.mxu0 0
    %963 = vmatpush.bf16.msra.mxu0 0
    %964 = vmatpush.bf16.msra.mxu0 0
    %965 = vmatpush.bf16.msra.mxu0 0
    %966 = vmatpush.bf16.msra.mxu0 0
    %967 = vmatpush.bf16.msra.mxu0 0
    %968 = vmatpush.bf16.msra.mxu0 %v942
    %969 = vmatmul.bf16.gmra.mxu0 %v936
    %v970 = vpop.f32.mrf.mxu0
    %v971 = vadd.f32 %v923, %v970
    %v972 = vpop.f32.mrf.mxu0
    %v973 = vadd.f32 %v928, %v972
    %974 = vdwg.mxu0
    %975 = vmatpush.bf16.msra.mxu0 0
    %976 = vmatpush.bf16.msra.mxu0 0
    %977 = vmatpush.bf16.msra.mxu0 0
    %978 = vmatpush.bf16.msra.mxu0 0
    %979 = vmatpush.bf16.msra.mxu0 0
    %980 = vmatpush.bf16.msra.mxu0 0
    %981 = vmatpush.bf16.msra.mxu0 0
    %982 = vmatpush.bf16.msra.mxu0 %v945
    %983 = vmatmul.bf16.gmra.mxu0 %v936
    %v984 = vpop.f32.mrf.mxu0
    %v985 = vadd.f32 %v923, %v984
    %v986 = vpop.f32.mrf.mxu0
    %v987 = vadd.f32 %v928, %v986
    %988 = vdwg.mxu0
    %v989 = vadd.f32 %v910, %v957
    %v990 = vadd.f32 %v911, %v971
    %v991 = vadd.f32 %v912, %v985
    %v992 = vadd.f32 %v913, %v959
    %v993 = vadd.f32 %v914, %v973
    %v994 = vadd.f32 %v915, %v987
    %v995 = vmax.f32 %v989, 0.0
    %v996 = vmax.f32 %v990, 0.0
    %v997 = vmax.f32 %v991, 0.0
    %v998 = vmax.f32 %v992, 0.0
    %v999 = vmax.f32 %v993, 0.0
    %v1000 = vmax.f32 %v994, 0.0
    %v1001 = vmul.f32 %v995, %v192
    %v1002 = vmul.f32 %v996, %v193
    %v1003 = vmul.f32 %v997, %v194
    %v1004 = vmul.f32 %v998, %v192
    %v1005 = vmul.f32 %v999, %v193
    %v1006 = vmul.f32 %v1000, %v194
    %v1007 = vpack.c.bf16 %v1002, %v1001
    %v1008 = vpack.c.bf16 %v1003, %v1003
    %v1009 = vpack.c.bf16 %v1005, %v1004
    %v1010 = vpack.c.bf16 %v1006, %v1006
    %1011 = vst [vmem:[#allocation2 + $0x4] sm:$0xff] %v1007
    %1012 = vst [vmem:[#allocation2 + $0xc] sm:$0xf] %v1008
    %1013 = vst [vmem:[#allocation2 + $0x14] sm:$0xff] %v1009
    %1014 = vst [vmem:[#allocation2 + $0x1c] sm:$0xf] %v1010
    %1015 = vst [vmem:[#allocation4] sm:$0xff] %v1001
    %1016 = vst [vmem:[#allocation4 + $0x8] sm:$0xff] %v1004
    %s1017 = scalar_lea.vmem [#allocation4], 16
    %1018 = vst [vmem:[%s1017] sm:$0xff] %v1003
    %1019 = vst [vmem:[%s1017 + $0x8] sm:$0xff] %v1006
    // Predicated region
    $region74: #{tpu_custom_call.1} parent=1 // pred_check
      _
    $region75: #{tpu_custom_call.1} parent=1 // pred_check_branch
      %1021 = sbr.rel (0) target = $region77
    $region76: #{tpu_custom_call.1} parent=1 // pred_region
      %1023 = vsyncadd [#allocation5], 0
      %s1024 = sshll.u32 [#allocation4], 4
      %s1025 = int_to_ptr.vmem [resolvable:$true] %s1024
      %s1026 = sshll.u32 %s18, 4
      %s1027 = int_to_ptr.hbm [resolvable:$true] %s1026
      %1032 = dma.vmem_to_hbm [thread:$0]  %s1025, 512, %s1027, [#allocation5], 128, 128, 8
    $region77: #{tpu_custom_call.1} parent=1 // pred_fallthru
      _
    // Predicated region
    $region78: #{tpu_custom_call.1} parent=1 // pred_check
      _
    $region79: #{tpu_custom_call.1} parent=1 // pred_check_branch
      %1034 = sbr.rel (0) target = $region81
    $region80: #{tpu_custom_call.1} parent=1 // pred_region
      %1036 = dma.done [#allocation5], 512
    $region81: #{tpu_custom_call.1} parent=1 // pred_fallthru
      _
    %1037 = vsyncpa [#allocation5], 1

</llo_original>
